<compile_context>
chip_gen: v7x
topology: tpu7x:2x2x1
jax: 0.10.0
libtpu: 0.0.40
codegen_flags: <defaults>
</compile_context>

<pallas_src>
import functools

import jax
import jax.numpy as jnp
from jax.experimental import pallas as pl
from jax.experimental.pallas import tpu as pltpu

_LANE = 128
_SUBLANE = 8
_FALLBACK_VMEM_BUDGET = 48 * 1024 * 1024  # used only if get_tpu_info is unavailable

ACTIVATIONS = {
    "id": lambda x: x,
    "tanh": jnp.tanh,
    "sigmoid": jax.nn.sigmoid,
    # torch.nn.GELU defaults to the exact erf form -> match it here.
    "gelu": lambda x: jax.nn.gelu(x, approximate=False),
    "elu": jax.nn.elu,
    "softplus": jax.nn.softplus,
    "silu": jax.nn.silu,
    "celu": jax.nn.celu,
    "gaussian": lambda x: jnp.exp(-x * x),
}


def _round_up(x, m):
    return ((x + m - 1) // m) * m


def _pad_to(a, shape):
    pads = [(0, t - s) for s, t in zip(a.shape, shape)]
    return jnp.pad(a, pads)


def _vmem_budget_bytes():
    """Generation-aware scoped-VMEM budget."""
    try:
        cap = getattr(pltpu.get_tpu_info(), "vmem_capacity_bytes", None)
        if cap is None:
            return _FALLBACK_VMEM_BUDGET
        if cap >= (100 << 20):          # 128 MiB parts (v5e / v6e): use ~75%
            return int(cap * 0.75)
        return int(cap * 0.60)          # 64 MiB parts (v7x): leave Mosaic headroom
    except Exception:
        return _FALLBACK_VMEM_BUDGET


def _default_act_dtype(compute_dtype):
    """bf16 bias-add/activations only on chips with bf16 VPU/EUP (v6e/v7x)."""
    if jnp.dtype(compute_dtype) != jnp.dtype(jnp.bfloat16):
        return jnp.dtype(jnp.float32)
    try:
        kind = jax.devices()[0].device_kind.lower()
    except Exception:
        return jnp.dtype(jnp.float32)
    if any(tag in kind for tag in ("v2", "v3", "v4", "v5")):
        return jnp.dtype(jnp.float32)   # no bf16 VPU/EUP on these parts
    return jnp.dtype(jnp.bfloat16)


def mlp_kernel(x_ref, w_in_ref, b_in_ref, w_hid_ref, b_hid_ref,
               w_out_ref, b_out_ref, o_ref, *,
               num_layers, act_name, final_act_name, compute_dtype, act_dtype):
    """Whole-MLP forward for one batch tile.

    All matmuls hit the MXU with f32 accumulation; the (small, lane-padded) weight
    stack is VMEM-resident across the batch grid (constant index_map).  Bias-add and
    activations run in act_dtype (bf16 on v6e/v7x, f32 otherwise).
    """
    act = ACTIVATIONS[act_name]
    fact = ACTIVATIONS[final_act_name]

    def layer(h, w, b, f):
        z = jnp.dot(h, w, preferred_element_type=jnp.float32)
        return f(z.astype(act_dtype) + b)

    # Input layer: cast x to the matmul dtype in VMEM (no wrapper-side copy of x).
    xs = x_ref[...].astype(compute_dtype)
    h = layer(xs, w_in_ref[...], b_in_ref[...], act).astype(compute_dtype)

    # Hidden layers: fully unrolled (static addressing, full LLO visibility) for
    # typical depths; bounded fori_loop only for unusually deep stacks.
    if num_layers > 0:
        if num_layers <= 16:
            for i in range(num_layers):
                h = layer(h, w_hid_ref[i], b_hid_ref[i], act).astype(compute_dtype)
        else:
            def hidden_layer(i, h):
                return layer(h, w_hid_ref[i], b_hid_ref[i], act).astype(compute_dtype)
            h = jax.lax.fori_loop(0, num_layers, hidden_layer, h, unroll=True)

    # Output layer + final activation (lane-dense store: width is a multiple of 128).
    o_ref[...] = layer(h, w_out_ref[...], b_out_ref[...], fact).astype(o_ref.dtype)


def _const_spec(shape):
    """BlockSpec for a grid-invariant (weight/bias) input: constant index_map,
    so Pallas fetches the block once and revisits it for every grid step."""
    ndim = len(shape)
    return pl.BlockSpec(shape, lambda i: (0,) * ndim)


def _pick_tile_n(n, input_dim, hid_p, d_out_p, num_layers, *,
                 w_itemsize, x_itemsize, out_itemsize, b_itemsize, budget):
    """Batch tile: multiple of 8 sublanes, up to 1024 rows, halved until the rough
    VMEM footprint fits the generation-aware budget."""
    tile = min(_round_up(max(n, _SUBLANE), _SUBLANE), 1024)

    weights = (input_dim * hid_p + num_layers * hid_p * hid_p
               + hid_p * d_out_p) * w_itemsize
    biases = ((num_layers + 1) * hid_p + d_out_p) * b_itemsize
    # Constant index_map -> weights are DMA'd once, but Pallas still allocates two
    # buffers per input, so account 2x (correct, not an over-count).
    wmem = 2 * (weights + biases)

    def est(t):
        io = 2 * t * (input_dim * x_itemsize + d_out_p * out_itemsize)  # dbl-buffered x/out
        live = 3 * t * hid_p * 4                                        # live intermediates
        return wmem + io + live

    while tile > _SUBLANE and est(tile) > budget:
        tile = max(_SUBLANE, _round_up(tile // 2, _SUBLANE))
    # TODO(synk): if wmem alone exceeds the budget (very large L*H^2), a weight-
    # streaming path (w_hid in HBM via memory_space=pl.ANY + per-layer double-buffered
    # DMA) is needed; not implemented here — shrinking tile_n cannot fix that case.
    return tile


def feedforward_forward(x, params, *, num_layers, activation="tanh", final_act="id",
                        tile_n=None, compute_dtype=jnp.bfloat16, out_dtype=None):
    """Pallas wrapper reproducing FeedForwardNeuralNet.forward semantics."""
    w_in, b_in, w_hid, b_hid, w_out, b_out = params
    n, input_dim = x.shape
    hidden_dim = w_in.shape[1]
    output_dim = w_out.shape[1]
    compute_dtype = jnp.dtype(compute_dtype)
    out_dtype = compute_dtype if out_dtype is None else jnp.dtype(out_dtype)
    act_dtype = _default_act_dtype(compute_dtype)

    # Only the OUTPUT-feature (lane) dims are padded; x / w_in rows stay unpadded.
    hid_p = _round_up(hidden_dim, _LANE)
    d_out_p = _round_up(output_dim, _LANE)

    budget = _vmem_budget_bytes()
    if tile_n is None:
        tile_n = _pick_tile_n(
            n, input_dim, hid_p, d_out_p, num_layers,
            w_itemsize=compute_dtype.itemsize, x_itemsize=x.dtype.itemsize,
            out_itemsize=out_dtype.itemsize, b_itemsize=act_dtype.itemsize,
            budget=budget)
    tile_n = max(_SUBLANE, _round_up(min(tile_n, n), _SUBLANE))
    # Keep >= 2 grid steps when the batch allows it, so the "parallel" axis can be
    # sharded across v7x's two TensorCores.
    if n > 2 * _SUBLANE and pl.cdiv(n, tile_n) < 2:
        tile_n = max(_SUBLANE, _round_up(pl.cdiv(n, 2), _SUBLANE))
    grid = (pl.cdiv(n, tile_n),)

    # Weight prep (tiny, one-time): pre-transposed (in, out), lane dims zero-padded.
    w_in_p = _pad_to(w_in, (input_dim, hid_p)).astype(compute_dtype)
    b_in_p = _pad_to(b_in, (1, hid_p)).astype(act_dtype)
    if num_layers > 0:
        w_hid_p = _pad_to(w_hid, (num_layers, hid_p, hid_p)).astype(compute_dtype)
        b_hid_p = _pad_to(b_hid, (num_layers, 1, hid_p)).astype(act_dtype)
    else:
        # Never read; minimal dummy instead of a full HxH zero slab.
        w_hid_p = jnp.zeros((1, _SUBLANE, _LANE), compute_dtype)
        b_hid_p = jnp.zeros((1, 1, _LANE), act_dtype)
    w_out_p = _pad_to(w_out, (hid_p, d_out_p)).astype(compute_dtype)
    b_out_p = _pad_to(b_out, (1, d_out_p)).astype(act_dtype)
    weight_args = (w_in_p, b_in_p, w_hid_p, b_hid_p, w_out_p, b_out_p)

    kernel = functools.partial(
        mlp_kernel, num_layers=num_layers, act_name=activation,
        final_act_name=final_act, compute_dtype=compute_dtype, act_dtype=act_dtype)

    flops = 2 * n * (input_dim * hid_p + num_layers * hid_p * hid_p + hid_p * d_out_p)
    transcendentals = n * hid_p * (num_layers + 1)
    bytes_accessed = int(x.size * x.dtype.itemsize
                         + sum(int(a.size) * a.dtype.itemsize for a in weight_args)
                         + n * d_out_p * out_dtype.itemsize)
    cost = pl.CostEstimate(flops=int(flops), transcendentals=int(transcendentals),
                           bytes_accessed=bytes_accessed)

    in_specs = [pl.BlockSpec((tile_n, input_dim), lambda i: (i, 0))]   # x: tiled batch
    in_specs += [_const_spec(a.shape) for a in weight_args]

    out_p = pl.pallas_call(
        kernel,
        out_shape=jax.ShapeDtypeStruct((n, d_out_p), out_dtype),
        grid_spec=pltpu.PrefetchScalarGridSpec(
            num_scalar_prefetch=0,
            grid=grid,
            in_specs=in_specs,
            out_specs=pl.BlockSpec((tile_n, d_out_p), lambda i: (i, 0)),
        ),
        compiler_params=pltpu.CompilerParams(
            # Batch axis carries no accumulator -> legally parallel (megacore on v7x).
            dimension_semantics=("parallel",),
            vmem_limit_bytes=budget,
        ),
        cost_estimate=cost,
    )(x, *weight_args)

    return out_p[:n, :output_dim]


def init_params(key, input_dim, output_dim, hidden_dim, num_layers):
    """Deterministic init mimicking torch.nn.Linear defaults (U(-1/sqrt(fan_in), ..)).
    Weights are returned already transposed to (in, out)."""
    keys = jax.random.split(key, 6)

    def uniform(k, shape, fan_in):
        bound = 1.0 / jnp.sqrt(fan_in)
        return jax.random.uniform(k, shape, jnp.float32, -bound, bound)

    w_in = uniform(keys[0], (input_dim, hidden_dim), input_dim)
    b_in = uniform(keys[1], (1, hidden_dim), input_dim)
    w_hid = uniform(keys[2], (max(num_layers, 1), hidden_dim, hidden_dim), hidden_dim)
    b_hid = uniform(keys[3], (max(num_layers, 1), 1, hidden_dim), hidden_dim)
    w_out = uniform(keys[4], (hidden_dim, output_dim), hidden_dim)
    b_out = uniform(keys[5], (1, output_dim), hidden_dim)
    return w_in, b_in, w_hid, b_hid, w_out, b_out


def reference_forward(x, params, *, num_layers, activation="tanh", final_act="id"):
    """Pure-JAX reference of the PyTorch forward()."""
    w_in, b_in, w_hid, b_hid, w_out, b_out = params
    act = ACTIVATIONS[activation]
    fact = ACTIVATIONS[final_act]
    h = act(x @ w_in + b_in)
    for i in range(num_layers):
        h = act(h @ w_hid[i] + b_hid[i])
    return fact(h @ w_out + b_out)


# TODO(synk): jacobian_network / _compute_jacobian and the MSELoss training helpers are
# not part of forward() and are not implemented as kernels here.

if __name__ == "__main__":
    # (n, D) -> (n, d). n is not a multiple of the default tile and forces >= 2 grid
    # steps; feature dims are deliberately small / non-128-aligned.
    n, input_dim, output_dim, hidden_dim, num_layers = 1000, 4, 4, 32, 2
    activation, final_act = "tanh", "id"

    key = jax.random.PRNGKey(0)
    kx, kp = jax.random.split(key)
    x = jax.random.normal(kx, (n, input_dim), jnp.float32)
    params = init_params(kp, input_dim, output_dim, hidden_dim, num_layers)

    ref = reference_forward(x, params, num_layers=num_layers,
                            activation=activation, final_act=final_act)

    # f32 compute path: exact parity with the reference.
    out_f32 = feedforward_forward(x, params, num_layers=num_layers,
                                  activation=activation, final_act=final_act,
                                  compute_dtype=jnp.float32)
    out_f32 = jax.block_until_ready(out_f32)
    assert out_f32.shape == (n, output_dim)
    assert jnp.allclose(out_f32, ref, atol=1e-5, rtol=1e-5), (
        f"f32 max abs err = {jnp.max(jnp.abs(out_f32 - ref))}")

    # bf16 path (bf16 matmuls with f32 MXU accumulation; bf16 acts on v6e/v7x,
    # bf16 output store): looser tolerance.
    out_bf16 = feedforward_forward(x, params, num_layers=num_layers,
                                   activation=activation, final_act=final_act,
                                   compute_dtype=jnp.bfloat16)
    out_bf16 = jax.block_until_ready(out_bf16)
    assert out_bf16.shape == (n, output_dim)
    assert jnp.allclose(out_bf16.astype(jnp.float32), ref, atol=5e-2, rtol=5e-2), (
        f"bf16 max abs err = {jnp.max(jnp.abs(out_bf16.astype(jnp.float32) - ref))}")

    # num_layers == 0 path (dummy hidden weights, single small tile), sigmoid final act.
    params0 = init_params(kp, input_dim, output_dim, hidden_dim, 0)
    x0 = x[:16]
    ref0 = reference_forward(x0, params0, num_layers=0,
                             activation=activation, final_act="sigmoid")
    out0 = feedforward_forward(x0, params0, num_layers=0,
                               activation=activation, final_act="sigmoid",
                               compute_dtype=jnp.float32)
    out0 = jax.block_until_ready(out0)
    assert jnp.allclose(out0, ref0, atol=1e-5, rtol=1e-5), (
        f"L=0 max abs err = {jnp.max(jnp.abs(out0 - ref0))}")

    print("KERNEL_OK")
</pallas_src>

<mosaic_0001>
module attributes {stable_mosaic.version = 11 : i64} {
  func.func @mlp_kernel(%arg0: i32, %arg1: memref<504x4xf32, #tpu.memory_space<vmem>>, %arg2: memref<4x128xf32, #tpu.memory_space<vmem>>, %arg3: memref<1x128xf32, #tpu.memory_space<vmem>>, %arg4: memref<2x128x128xf32, #tpu.memory_space<vmem>>, %arg5: memref<2x1x128xf32, #tpu.memory_space<vmem>>, %arg6: memref<128x128xf32, #tpu.memory_space<vmem>>, %arg7: memref<1x128xf32, #tpu.memory_space<vmem>>, %arg8: memref<504x128xf32, #tpu.memory_space<vmem>>) attributes {dimension_semantics = [#tpu.dimension_semantics<parallel>], iteration_bounds = array<i64: 2>, scalar_prefetch = 0 : i64, scratch_operands = 0 : i64, tpu.core_type = #tpu.core_type<tc>, window_params = [{transform_indices = @transform_0, window_bounds = array<i64: 504, 4>}, {pipeline_mode = #tpu.pipeline_mode<synchronous>, transform_indices = @transform_1, window_bounds = array<i64: 4, 128>}, {pipeline_mode = #tpu.pipeline_mode<synchronous>, transform_indices = @transform_2, window_bounds = array<i64: 1, 128>}, {pipeline_mode = #tpu.pipeline_mode<synchronous>, transform_indices = @transform_3, window_bounds = array<i64: 2, 128, 128>}, {pipeline_mode = #tpu.pipeline_mode<synchronous>, transform_indices = @transform_4, window_bounds = array<i64: 2, 1, 128>}, {pipeline_mode = #tpu.pipeline_mode<synchronous>, transform_indices = @transform_5, window_bounds = array<i64: 128, 128>}, {pipeline_mode = #tpu.pipeline_mode<synchronous>, transform_indices = @transform_6, window_bounds = array<i64: 1, 128>}, {transform_indices = @transform_7, window_bounds = array<i64: 504, 128>}]} {
    %c0 = arith.constant 0 : index
    %c0_0 = arith.constant 0 : index
    %0 = vector.load %arg1[%c0, %c0_0] : memref<504x4xf32, #tpu.memory_space<vmem>>, vector<504x4xf32>
    %c0_1 = arith.constant 0 : index
    %c0_2 = arith.constant 0 : index
    %1 = vector.load %arg2[%c0_1, %c0_2] : memref<4x128xf32, #tpu.memory_space<vmem>>, vector<4x128xf32>
    %c0_3 = arith.constant 0 : index
    %c0_4 = arith.constant 0 : index
    %2 = vector.load %arg3[%c0_3, %c0_4] : memref<1x128xf32, #tpu.memory_space<vmem>>, vector<1x128xf32>
    %cst = arith.constant dense<0.000000e+00> : vector<504x128xf32>
    %3 = tpu.matmul %0, %1, %cst {dimension_numbers = #tpu.dot_dimension_numbers<[1], [0], [0], [1], [0, 0, 1, 1], [], []>} : vector<504x4xf32>, vector<4x128xf32>, vector<504x128xf32> -> vector<504x128xf32>
    %4 = vector.broadcast %2 : vector<1x128xf32> to vector<504x128xf32>
    %5 = arith.addf %3, %4 : vector<504x128xf32>
    %6 = math.tanh %5 : vector<504x128xf32>
    %c0_5 = arith.constant 0 : index
    %c0_6 = arith.constant 0 : index
    %c0_7 = arith.constant 0 : index
    %7 = vector.load %arg4[%c0_5, %c0_6, %c0_7] : memref<2x128x128xf32, #tpu.memory_space<vmem>>, vector<1x128x128xf32>
    %8 = vector.shape_cast %7 : vector<1x128x128xf32> to vector<128x128xf32>
    %c0_8 = arith.constant 0 : index
    %c0_9 = arith.constant 0 : index
    %c0_10 = arith.constant 0 : index
    %9 = vector.load %arg5[%c0_8, %c0_9, %c0_10] : memref<2x1x128xf32, #tpu.memory_space<vmem>>, vector<1x1x128xf32>
    %10 = vector.shape_cast %9 : vector<1x1x128xf32> to vector<1x128xf32>
    %cst_11 = arith.constant dense<0.000000e+00> : vector<504x128xf32>
    %11 = tpu.matmul %6, %8, %cst_11 {dimension_numbers = #tpu.dot_dimension_numbers<[1], [0], [0], [1], [0, 0, 1, 1], [], []>} : vector<504x128xf32>, vector<128x128xf32>, vector<504x128xf32> -> vector<504x128xf32>
    %12 = vector.broadcast %10 : vector<1x128xf32> to vector<504x128xf32>
    %13 = arith.addf %11, %12 : vector<504x128xf32>
    %14 = math.tanh %13 : vector<504x128xf32>
    %c1 = arith.constant 1 : index
    %c0_12 = arith.constant 0 : index
    %c0_13 = arith.constant 0 : index
    %15 = vector.load %arg4[%c1, %c0_12, %c0_13] : memref<2x128x128xf32, #tpu.memory_space<vmem>>, vector<1x128x128xf32>
    %16 = vector.shape_cast %15 : vector<1x128x128xf32> to vector<128x128xf32>
    %c1_14 = arith.constant 1 : index
    %c0_15 = arith.constant 0 : index
    %c0_16 = arith.constant 0 : index
    %17 = vector.load %arg5[%c1_14, %c0_15, %c0_16] : memref<2x1x128xf32, #tpu.memory_space<vmem>>, vector<1x1x128xf32>
    %18 = vector.shape_cast %17 : vector<1x1x128xf32> to vector<1x128xf32>
    %cst_17 = arith.constant dense<0.000000e+00> : vector<504x128xf32>
    %19 = tpu.matmul %14, %16, %cst_17 {dimension_numbers = #tpu.dot_dimension_numbers<[1], [0], [0], [1], [0, 0, 1, 1], [], []>} : vector<504x128xf32>, vector<128x128xf32>, vector<504x128xf32> -> vector<504x128xf32>
    %20 = vector.broadcast %18 : vector<1x128xf32> to vector<504x128xf32>
    %21 = arith.addf %19, %20 : vector<504x128xf32>
    %22 = math.tanh %21 : vector<504x128xf32>
    %c0_18 = arith.constant 0 : index
    %c0_19 = arith.constant 0 : index
    %23 = vector.load %arg6[%c0_18, %c0_19] : memref<128x128xf32, #tpu.memory_space<vmem>>, vector<128x128xf32>
    %c0_20 = arith.constant 0 : index
    %c0_21 = arith.constant 0 : index
    %24 = vector.load %arg7[%c0_20, %c0_21] : memref<1x128xf32, #tpu.memory_space<vmem>>, vector<1x128xf32>
    %cst_22 = arith.constant dense<0.000000e+00> : vector<504x128xf32>
    %25 = tpu.matmul %22, %23, %cst_22 {dimension_numbers = #tpu.dot_dimension_numbers<[1], [0], [0], [1], [0, 0, 1, 1], [], []>} : vector<504x128xf32>, vector<128x128xf32>, vector<504x128xf32> -> vector<504x128xf32>
    %26 = vector.broadcast %24 : vector<1x128xf32> to vector<504x128xf32>
    %27 = arith.addf %25, %26 : vector<504x128xf32>
    %c0_23 = arith.constant 0 : index
    %c0_24 = arith.constant 0 : index
    %28 = vector.load %arg8[%c0_23, %c0_24] : memref<504x128xf32, #tpu.memory_space<vmem>>, vector<504x128xf32>
    tpu.vector_store %arg8[%c0_23, %c0_24], %27 {strides = array<i32>} : memref<504x128xf32, #tpu.memory_space<vmem>>, vector<504x128xf32>,
    return
  }
  func.func @transform_0(%arg0: i32) -> (i32, i32) {
    %c0_i32 = arith.constant 0 : i32
    %c0_i32_0 = arith.constant 0 : i32
    return %arg0, %c0_i32 : i32, i32
  }
  func.func @transform_1(%arg0: i32) -> (i32, i32) {
    %c0_i32 = arith.constant 0 : i32
    %c0_i32_0 = arith.constant 0 : i32
    %c0_i32_1 = arith.constant 0 : i32
    return %c0_i32, %c0_i32_0 : i32, i32
  }
  func.func @transform_2(%arg0: i32) -> (i32, i32) {
    %c0_i32 = arith.constant 0 : i32
    %c0_i32_0 = arith.constant 0 : i32
    %c0_i32_1 = arith.constant 0 : i32
    return %c0_i32, %c0_i32_0 : i32, i32
  }
  func.func @transform_3(%arg0: i32) -> (i32, i32, i32) {
    %c0_i32 = arith.constant 0 : i32
    %c0_i32_0 = arith.constant 0 : i32
    %c0_i32_1 = arith.constant 0 : i32
    %c0_i32_2 = arith.constant 0 : i32
    return %c0_i32, %c0_i32_0, %c0_i32_1 : i32, i32, i32
  }
  func.func @transform_4(%arg0: i32) -> (i32, i32, i32) {
    %c0_i32 = arith.constant 0 : i32
    %c0_i32_0 = arith.constant 0 : i32
    %c0_i32_1 = arith.constant 0 : i32
    %c0_i32_2 = arith.constant 0 : i32
    return %c0_i32, %c0_i32_0, %c0_i32_1 : i32, i32, i32
  }
  func.func @transform_5(%arg0: i32) -> (i32, i32) {
    %c0_i32 = arith.constant 0 : i32
    %c0_i32_0 = arith.constant 0 : i32
    %c0_i32_1 = arith.constant 0 : i32
    return %c0_i32, %c0_i32_0 : i32, i32
  }
  func.func @transform_6(%arg0: i32) -> (i32, i32) {
    %c0_i32 = arith.constant 0 : i32
    %c0_i32_0 = arith.constant 0 : i32
    %c0_i32_1 = arith.constant 0 : i32
    return %c0_i32, %c0_i32_0 : i32, i32
  }
  func.func @transform_7(%arg0: i32) -> (i32, i32) {
    %c0_i32 = arith.constant 0 : i32
    %c0_i32_0 = arith.constant 0 : i32
    return %arg0, %c0_i32 : i32, i32
  }
}

</mosaic_0001>

<llo_original>
// kernel: tpu_custom_call.1
$region0: #{tpu_custom_call.1}
  #allocation0 [shape = 'u32[]', space=smem, size = 0x4, offset = 0x4, fixed_abs, tag = 'smem constant byte address 0x4 - core index']
  #allocation1 [shape = 'u32[144,128]{1,0:T(1,128)}', space=vmem, size = 0x12000, scoped, tag = 'internal scratch']
  %s0 = inlined_call_operand.vmem [shape: f32[1000,4], index: 0, kind: input, shape index: {}]
  %s1 = inlined_call_operand.vmem [shape: f32[4,128], index: 1, kind: input, shape index: {}]
  %s2 = inlined_call_operand.vmem [shape: f32[1,128], index: 2, kind: input, shape index: {}]
  %s3 = inlined_call_operand.vmem [shape: f32[2,128,128], index: 3, kind: input, shape index: {}]
  %s4 = inlined_call_operand.vmem [shape: f32[2,1,128], index: 4, kind: input, shape index: {}]
  %s5 = inlined_call_operand.vmem [shape: f32[128,128], index: 5, kind: input, shape index: {}]
  %s6 = inlined_call_operand.vmem [shape: f32[1,128], index: 6, kind: input, shape index: {}]
  %s7 = inlined_call_operand.hbm [shape: f32[1000,128], index: 7, kind: output, shape index: {}]
  %s8 = sld [smem:[#allocation0]]
  $region61: #{tpu_custom_call.1} parent=0
    _
  %s10 = ssub.s32 1, %s8
  %s11 = scalar_select 0, %s10, %s8
  $region1: #{tpu_custom_call.1} parent=0
    #allocation2 [shape = 'u8[516096]{0}', space=vmem, size = 0x7e000, scoped, tag = 'output window, operand 0']
    #allocation3 [shape = 's32[2]{0}', space=sflag, size = 0x8, scoped, tag = 'scoped memory for tpu_custom_call.1']
    %12 = vsyncpa [#allocation3], 0
    %s13 = scalar_lea.sflag [#allocation3], 1
    %14 = vsyncpa %s13, 0
    loop: start=0, step=1, limit=4
    $region2: #{tpu_custom_call.1} parent=1 // loop_pre_header
      _
    $region3: #{tpu_custom_call.1} parent=1 // loop_header
      %s16 = sphi 0, %s20
      %p17 = scmp.ge.s32.totalorder %s16, 4
      %s26 = sphi 0, %s28
      %s29 = sphi 0, %s26
      %s30 = sphi 0, %s29
      %s46 = sphi 0, %s30
      %s50 = sphi 0, %s50
      %s52 = sphi 0, %s50
      %s53 = sphi 0, %s52
      %s67 = sphi 0, %s53
      %s71 = sphi 0, %s71
      %s73 = sphi 0, %s71
      %s74 = sphi 0, %s73
      %s88 = sphi 0, %s74
      %s92 = sphi 0, %s92
      %s94 = sphi 0, %s92
      %s95 = sphi 0, %s94
      %s109 = sphi 0, %s95
      %s113 = sphi 0, %s113
      %s115 = sphi 0, %s113
      %s116 = sphi 0, %s115
      %s130 = sphi 0, %s116
      %s134 = sphi 0, %s134
      %s136 = sphi 0, %s134
      %s137 = sphi 0, %s136
      %s151 = sphi 0, %s137
      %s155 = sphi 0, %s155
      %s157 = sphi 0, %s155
      %s158 = sphi 0, %s157
      %s172 = sphi 0, %s158
      %s178 = sphi 0, %s180
      %s181 = sphi 0, %s178
      %s182 = sphi 0, %s181
      %s198 = sphi 0, %s182
    $region4: #{tpu_custom_call.1} parent=1 // loop_header_branch
      %19 = sbr.rel (%p17) target = $region8
    $region5: #{tpu_custom_call.1} parent=1 // loop_body
      %s21 = ssub.s32 %s16, 1
      %s22 = ssub.s32 %s16, 2
      %s23 = sadd.s32 %s16, 1
      %s24 = ssub.s32 %s16, %s23
      %p25 = scmp.eq.s32.totalorder %s24, 0
      %s27 = sadd.s32 %s26, 1
      %s28 = scalar_select %p25, %s26, %s27
      %p31 = pneg %p25
      %p32 = scmp.eq.s32.totalorder %s16, 1
      %p33 = por %p31, %p32
      %p34 = scmp.ne.s32.totalorder %s26, %s29
      %p35 = scmp.eq.s32.totalorder %s16, 0
      %p36 = por %p34, %p35
      %p37 = scmp.ne.s32.totalorder %s26, %s29
      %p38 = scmp.eq.s32.totalorder %s21, 1
      %p39 = por %p37, %p38
      %p40 = scmp.ne.s32.totalorder %s29, %s30
      %p41 = scmp.eq.s32.totalorder %s21, 0
      %p42 = por %p40, %p41
      %p43 = scmp.ne.s32.totalorder %s29, %s30
      %p44 = scmp.eq.s32.totalorder %s22, 1
      %p45 = por %p43, %p44
      %p47 = scmp.ne.s32.totalorder %s30, %s46
      %p48 = scmp.eq.s32.totalorder %s22, 0
      %p49 = por %p47, %p48
      %s51 = sadd.s32 %s50, 1
      %p54 = scmp.eq.s32.totalorder %s16, 1
      %p55 = scmp.ne.s32.totalorder %s50, %s52
      %p56 = scmp.eq.s32.totalorder %s16, 0
      %p57 = por %p55, %p56
      %p58 = scmp.ne.s32.totalorder %s50, %s52
      %p59 = scmp.eq.s32.totalorder %s21, 1
      %p60 = por %p58, %p59
      %p61 = scmp.ne.s32.totalorder %s52, %s53
      %p62 = scmp.eq.s32.totalorder %s21, 0
      %p63 = por %p61, %p62
      %p64 = scmp.ne.s32.totalorder %s52, %s53
      %p65 = scmp.eq.s32.totalorder %s22, 1
      %p66 = por %p64, %p65
      %p68 = scmp.ne.s32.totalorder %s53, %s67
      %p69 = scmp.eq.s32.totalorder %s22, 0
      %p70 = por %p68, %p69
      %s72 = sadd.s32 %s71, 1
      %p75 = scmp.eq.s32.totalorder %s16, 1
      %p76 = scmp.ne.s32.totalorder %s71, %s73
      %p77 = scmp.eq.s32.totalorder %s16, 0
      %p78 = por %p76, %p77
      %p79 = scmp.ne.s32.totalorder %s71, %s73
      %p80 = scmp.eq.s32.totalorder %s21, 1
      %p81 = por %p79, %p80
      %p82 = scmp.ne.s32.totalorder %s73, %s74
      %p83 = scmp.eq.s32.totalorder %s21, 0
      %p84 = por %p82, %p83
      %p85 = scmp.ne.s32.totalorder %s73, %s74
      %p86 = scmp.eq.s32.totalorder %s22, 1
      %p87 = por %p85, %p86
      %p89 = scmp.ne.s32.totalorder %s74, %s88
      %p90 = scmp.eq.s32.totalorder %s22, 0
      %p91 = por %p89, %p90
      %s93 = sadd.s32 %s92, 1
      %p96 = scmp.eq.s32.totalorder %s16, 1
      %p97 = scmp.ne.s32.totalorder %s92, %s94
      %p98 = scmp.eq.s32.totalorder %s16, 0
      %p99 = por %p97, %p98
      %p100 = scmp.ne.s32.totalorder %s92, %s94
      %p101 = scmp.eq.s32.totalorder %s21, 1
      %p102 = por %p100, %p101
      %p103 = scmp.ne.s32.totalorder %s94, %s95
      %p104 = scmp.eq.s32.totalorder %s21, 0
      %p105 = por %p103, %p104
      %p106 = scmp.ne.s32.totalorder %s94, %s95
      %p107 = scmp.eq.s32.totalorder %s22, 1
      %p108 = por %p106, %p107
      %p110 = scmp.ne.s32.totalorder %s95, %s109
      %p111 = scmp.eq.s32.totalorder %s22, 0
      %p112 = por %p110, %p111
      %s114 = sadd.s32 %s113, 1
      %p117 = scmp.eq.s32.totalorder %s16, 1
      %p118 = scmp.ne.s32.totalorder %s113, %s115
      %p119 = scmp.eq.s32.totalorder %s16, 0
      %p120 = por %p118, %p119
      %p121 = scmp.ne.s32.totalorder %s113, %s115
      %p122 = scmp.eq.s32.totalorder %s21, 1
      %p123 = por %p121, %p122
      %p124 = scmp.ne.s32.totalorder %s115, %s116
      %p125 = scmp.eq.s32.totalorder %s21, 0
      %p126 = por %p124, %p125
      %p127 = scmp.ne.s32.totalorder %s115, %s116
      %p128 = scmp.eq.s32.totalorder %s22, 1
      %p129 = por %p127, %p128
      %p131 = scmp.ne.s32.totalorder %s116, %s130
      %p132 = scmp.eq.s32.totalorder %s22, 0
      %p133 = por %p131, %p132
      %s135 = sadd.s32 %s134, 1
      %p138 = scmp.eq.s32.totalorder %s16, 1
      %p139 = scmp.ne.s32.totalorder %s134, %s136
      %p140 = scmp.eq.s32.totalorder %s16, 0
      %p141 = por %p139, %p140
      %p142 = scmp.ne.s32.totalorder %s134, %s136
      %p143 = scmp.eq.s32.totalorder %s21, 1
      %p144 = por %p142, %p143
      %p145 = scmp.ne.s32.totalorder %s136, %s137
      %p146 = scmp.eq.s32.totalorder %s21, 0
      %p147 = por %p145, %p146
      %p148 = scmp.ne.s32.totalorder %s136, %s137
      %p149 = scmp.eq.s32.totalorder %s22, 1
      %p150 = por %p148, %p149
      %p152 = scmp.ne.s32.totalorder %s137, %s151
      %p153 = scmp.eq.s32.totalorder %s22, 0
      %p154 = por %p152, %p153
      %s156 = sadd.s32 %s155, 1
      %p159 = scmp.eq.s32.totalorder %s16, 1
      %p160 = scmp.ne.s32.totalorder %s155, %s157
      %p161 = scmp.eq.s32.totalorder %s16, 0
      %p162 = por %p160, %p161
      %p163 = scmp.ne.s32.totalorder %s155, %s157
      %p164 = scmp.eq.s32.totalorder %s21, 1
      %p165 = por %p163, %p164
      %p166 = scmp.ne.s32.totalorder %s157, %s158
      %p167 = scmp.eq.s32.totalorder %s21, 0
      %p168 = por %p166, %p167
      %p169 = scmp.ne.s32.totalorder %s157, %s158
      %p170 = scmp.eq.s32.totalorder %s22, 1
      %p171 = por %p169, %p170
      %p173 = scmp.ne.s32.totalorder %s158, %s172
      %p174 = scmp.eq.s32.totalorder %s22, 0
      %p175 = por %p173, %p174
      %s176 = ssub.s32 %s16, %s23
      %p177 = scmp.eq.s32.totalorder %s176, 0
      %s179 = sadd.s32 %s178, 1
      %s180 = scalar_select %p177, %s178, %s179
      %p183 = pneg %p177
      %p184 = scmp.eq.s32.totalorder %s16, 1
      %p185 = por %p183, %p184
      %p186 = scmp.ne.s32.totalorder %s178, %s181
      %p187 = scmp.eq.s32.totalorder %s16, 0
      %p188 = por %p186, %p187
      %p189 = scmp.ne.s32.totalorder %s178, %s181
      %p190 = scmp.eq.s32.totalorder %s21, 1
      %p191 = por %p189, %p190
      %p192 = scmp.ne.s32.totalorder %s181, %s182
      %p193 = scmp.eq.s32.totalorder %s21, 0
      %p194 = por %p192, %p193
      %p195 = scmp.ne.s32.totalorder %s181, %s182
      %p196 = scmp.eq.s32.totalorder %s22, 1
      %p197 = por %p195, %p196
      %p199 = scmp.ne.s32.totalorder %s182, %s198
      %p200 = scmp.eq.s32.totalorder %s22, 0
      %p201 = por %p199, %p200
      %p202 = scmp.le.s32.totalorder 1, %s16
      %p203 = scmp.lt.s32.totalorder %s16, 3
      %p204 = pnand %p202, %p203
      %p205 = pneg %p204
      // Predicated region
      $region9: #{tpu_custom_call.1} parent=5 // pred_check
        _
      $region10: #{tpu_custom_call.1} parent=5 // pred_check_branch
        %207 = sbr.rel (%p204) target = $region12
      $region11: #{tpu_custom_call.1} parent=5 // pred_region
        %s208 = ssub.s32 %s16, 1
        // Predicated region
        $region13: #{tpu_custom_call.1} parent=11 // pred_check
          %p209 = pneg %p63
        $region14: #{tpu_custom_call.1} parent=11 // pred_check_branch
          %211 = sbr.rel (%p209) target = $region16
        $region15: #{tpu_custom_call.1} parent=11 // pred_region
          _
        $region16: #{tpu_custom_call.1} parent=11 // pred_fallthru
          _
        // Predicated region
        $region17: #{tpu_custom_call.1} parent=11 // pred_check
          %p212 = pneg %p84
        $region18: #{tpu_custom_call.1} parent=11 // pred_check_branch
          %214 = sbr.rel (%p212) target = $region20
        $region19: #{tpu_custom_call.1} parent=11 // pred_region
          _
        $region20: #{tpu_custom_call.1} parent=11 // pred_fallthru
          _
        // Predicated region
        $region21: #{tpu_custom_call.1} parent=11 // pred_check
          %p215 = pneg %p105
        $region22: #{tpu_custom_call.1} parent=11 // pred_check_branch
          %217 = sbr.rel (%p215) target = $region24
        $region23: #{tpu_custom_call.1} parent=11 // pred_region
          _
        $region24: #{tpu_custom_call.1} parent=11 // pred_fallthru
          _
        // Predicated region
        $region25: #{tpu_custom_call.1} parent=11 // pred_check
          %p218 = pneg %p126
        $region26: #{tpu_custom_call.1} parent=11 // pred_check_branch
          %220 = sbr.rel (%p218) target = $region28
        $region27: #{tpu_custom_call.1} parent=11 // pred_region
          _
        $region28: #{tpu_custom_call.1} parent=11 // pred_fallthru
          _
        // Predicated region
        $region29: #{tpu_custom_call.1} parent=11 // pred_check
          %p221 = pneg %p147
        $region30: #{tpu_custom_call.1} parent=11 // pred_check_branch
          %223 = sbr.rel (%p221) target = $region32
        $region31: #{tpu_custom_call.1} parent=11 // pred_region
          _
        $region32: #{tpu_custom_call.1} parent=11 // pred_fallthru
          _
        // Predicated region
        $region33: #{tpu_custom_call.1} parent=11 // pred_check
          %p224 = pneg %p168
        $region34: #{tpu_custom_call.1} parent=11 // pred_check_branch
          %226 = sbr.rel (%p224) target = $region36
        $region35: #{tpu_custom_call.1} parent=11 // pred_region
          _
        $region36: #{tpu_custom_call.1} parent=11 // pred_fallthru
          _
      $region12: #{tpu_custom_call.1} parent=5 // pred_fallthru
        _
      %p227 = scmp.lt.s32.totalorder %s16, 2
      // Predicated region
      $region37: #{tpu_custom_call.1} parent=5 // pred_check
        %p228 = pneg %p227
      $region38: #{tpu_custom_call.1} parent=5 // pred_check_branch
        %230 = sbr.rel (%p228) target = $region40
      $region39: #{tpu_custom_call.1} parent=5 // pred_region
        // Predicated region
        $region41: #{tpu_custom_call.1} parent=39 // pred_check
          %p231 = pneg %p36
        $region42: #{tpu_custom_call.1} parent=39 // pred_check_branch
          %233 = sbr.rel (%p231) target = $region44
        $region43: #{tpu_custom_call.1} parent=39 // pred_region
          %s234 = smul.u32 63, %s16
          %s235 = ssub.s32 125, %s234
          %p236 = scmp.lt.s32.totalorder %s235, 63
          %s237 = scalar_select %p236, %s235, 63
          %s238 = smul.u32 128, %s237
          %p239 = scmp.lt.s32.totalorder %s234, 124
          %s240 = scalar_select %p239, %s234, 124
          %s241 = smul.addr %s240, 8
          %s242 = scalar_lea.vmem %s0, %s241
          %s243 = smul.u32 63, %s16
          %s244 = ssub.s32 125, %s243
          %p245 = scmp.lt.s32.totalorder %s244, 63
          %s246 = scalar_select %p245, %s244, 63
          %s247 = smul.u32 128, %s246
        $region44: #{tpu_custom_call.1} parent=39 // pred_fallthru
          _
      $region40: #{tpu_custom_call.1} parent=5 // pred_fallthru
        _
      %p248 = scmp.le.s32.totalorder 1, %s16
      %p249 = scmp.lt.s32.totalorder %s16, 3
      %p250 = pnand %p248, %p249
      %p251 = pneg %p250
      // Predicated region
      $region45: #{tpu_custom_call.1} parent=5 // pred_check
        _
      $region46: #{tpu_custom_call.1} parent=5 // pred_check_branch
        %253 = sbr.rel (%p250) target = $region48
      $region47: #{tpu_custom_call.1} parent=5 // pred_region
        %s254 = ssub.s32 %s16, 1
        %s255 = smul.u32 63, %s21
        %s256 = ssub.s32 125, %s255
        %p257 = scmp.lt.s32.totalorder %s256, 63
        %s258 = scalar_select %p257, %s256, 63
        %s259 = smul.u32 128, %s258
        %p260 = scmp.lt.s32.totalorder %s255, 124
        %s261 = scalar_select %p260, %s255, 124
        %s262 = smul.addr %s261, 8
        %s263 = scalar_lea.vmem %s0, %s262
        %p264 = pneg %p42
        %p265 = pneg %p39
        %p266 = pneg %p63
        %p267 = pneg %p60
        %p268 = pneg %p84
        %p269 = pneg %p81
        %p270 = pneg %p105
        %p271 = pneg %p102
        %p272 = pneg %p126
        %p273 = pneg %p123
        %p274 = pneg %p147
        %p275 = pneg %p144
        %p276 = pneg %p168
        %p277 = pneg %p165
        %p278 = pneg %p194
        %p279 = pneg %p191
        %s280 = sand.u32 %s181, 1
        %s281 = scalar_lea.sflag [#allocation3], %s280
        %s282 = sand.u32 %s181, 1
        %s283 = smul.addr %s282, 504
        %s284 = scalar_lea.vmem [#allocation2], %s283
        %s285 = smul.u32 63, %s21
        %s286 = ssub.s32 125, %s285
        %p287 = scmp.lt.s32.totalorder %s286, 63
        %s288 = scalar_select %p287, %s286, 63
        %s289 = smul.u32 128, %s288
        %p290 = scmp.lt.s32.totalorder %s285, 124
        %s291 = scalar_select %p290, %s285, 124
        %s292 = smul.addr %s291, 8
        %s293 = scalar_lea.vmem %s0, %s292
        %s294 = smul.u32 63, %s21
        %s295 = ssub.s32 125, %s294
        %p296 = scmp.lt.s32.totalorder %s295, 63
        %s297 = scalar_select %p296, %s295, 63
        %s298 = smul.u32 128, %s297
        %s299 = smul.u32 63, %s21
        %s300 = ssub.s32 125, %s299
        %p301 = scmp.lt.s32.totalorder %s300, 63
        %s302 = scalar_select %p301, %s300, 63
        %s303 = smul.u32 128, %s302
        %v304 = vld [vmem:[%s293] sm:$0xff]
        %v305 = vld [vmem:[%s293 + $0x8] sm:$0xff]
        %v306 = vld [vmem:[%s293 + $0x10] sm:$0xff]
        %v307 = vld [vmem:[%s293 + $0x18] sm:$0xff]
        %v308 = vld [vmem:[%s293 + $0x20] sm:$0xff]
        %v309 = vld [vmem:[%s293 + $0x28] sm:$0xff]
        %v310 = vld [vmem:[%s293 + $0x30] sm:$0xff]
        %v311 = vld [vmem:[%s293 + $0x38] sm:$0xff]
        %v312 = vld [vmem:[%s293 + $0x40] sm:$0xff]
        %v313 = vld [vmem:[%s293 + $0x48] sm:$0xff]
        %v314 = vld [vmem:[%s293 + $0x50] sm:$0xff]
        %v315 = vld [vmem:[%s293 + $0x58] sm:$0xff]
        %v316 = vld [vmem:[%s293 + $0x60] sm:$0xff]
        %v317 = vld [vmem:[%s293 + $0x68] sm:$0xff]
        %v318 = vld [vmem:[%s293 + $0x70] sm:$0xff]
        %v319 = vld [vmem:[%s293 + $0x78] sm:$0xff]
        %v320 = vld [vmem:[%s293 + $0x80] sm:$0xff]
        %v321 = vld [vmem:[%s293 + $0x88] sm:$0xff]
        %v322 = vld [vmem:[%s293 + $0x90] sm:$0xff]
        %v323 = vld [vmem:[%s293 + $0x98] sm:$0xff]
        %v324 = vld [vmem:[%s293 + $0xa0] sm:$0xff]
        %v325 = vld [vmem:[%s293 + $0xa8] sm:$0xff]
        %v326 = vld [vmem:[%s293 + $0xb0] sm:$0xff]
        %v327 = vld [vmem:[%s293 + $0xb8] sm:$0xff]
        %v328 = vld [vmem:[%s293 + $0xc0] sm:$0xff]
        %v329 = vld [vmem:[%s293 + $0xc8] sm:$0xff]
        %v330 = vld [vmem:[%s293 + $0xd0] sm:$0xff]
        %v331 = vld [vmem:[%s293 + $0xd8] sm:$0xff]
        %v332 = vld [vmem:[%s293 + $0xe0] sm:$0xff]
        %v333 = vld [vmem:[%s293 + $0xe8] sm:$0xff]
        %v334 = vld [vmem:[%s293 + $0xf0] sm:$0xff]
        %v335 = vld [vmem:[%s293 + $0xf8] sm:$0xff]
        %v336 = vld [vmem:[%s293 + $0x100] sm:$0xff]
        %v337 = vld [vmem:[%s293 + $0x108] sm:$0xff]
        %v338 = vld [vmem:[%s293 + $0x110] sm:$0xff]
        %v339 = vld [vmem:[%s293 + $0x118] sm:$0xff]
        %v340 = vld [vmem:[%s293 + $0x120] sm:$0xff]
        %v341 = vld [vmem:[%s293 + $0x128] sm:$0xff]
        %v342 = vld [vmem:[%s293 + $0x130] sm:$0xff]
        %v343 = vld [vmem:[%s293 + $0x138] sm:$0xff]
        %v344 = vld [vmem:[%s293 + $0x140] sm:$0xff]
        %v345 = vld [vmem:[%s293 + $0x148] sm:$0xff]
        %v346 = vld [vmem:[%s293 + $0x150] sm:$0xff]
        %v347 = vld [vmem:[%s293 + $0x158] sm:$0xff]
        %v348 = vld [vmem:[%s293 + $0x160] sm:$0xff]
        %v349 = vld [vmem:[%s293 + $0x168] sm:$0xff]
        %v350 = vld [vmem:[%s293 + $0x170] sm:$0xff]
        %v351 = vld [vmem:[%s293 + $0x178] sm:$0xff]
        %v352 = vld [vmem:[%s293 + $0x180] sm:$0xff]
        %v353 = vld [vmem:[%s293 + $0x188] sm:$0xff]
        %v354 = vld [vmem:[%s293 + $0x190] sm:$0xff]
        %v355 = vld [vmem:[%s293 + $0x198] sm:$0xff]
        %v356 = vld [vmem:[%s293 + $0x1a0] sm:$0xff]
        %v357 = vld [vmem:[%s293 + $0x1a8] sm:$0xff]
        %v358 = vld [vmem:[%s293 + $0x1b0] sm:$0xff]
        %v359 = vld [vmem:[%s293 + $0x1b8] sm:$0xff]
        %v360 = vld [vmem:[%s293 + $0x1c0] sm:$0xff]
        %v361 = vld [vmem:[%s293 + $0x1c8] sm:$0xff]
        %v362 = vld [vmem:[%s293 + $0x1d0] sm:$0xff]
        %v363 = vld [vmem:[%s293 + $0x1d8] sm:$0xff]
        %v364 = vld [vmem:[%s293 + $0x1e0] sm:$0xff]
        %v365 = vld [vmem:[%s293 + $0x1e8] sm:$0xff]
        %v366 = vld [vmem:[%s293 + $0x1f0] sm:$0xff]
        %v367 = vld [vmem:[%s1] sm:$0xf]
        %v368 = vld [vmem:[%s2] sm:$0x1]
        %v370 = vlaneseq
        %v371 = vshrl.u32 %v370, 7
        %v372 = vsub.s32 0, %v371
        %v373 = vrot.slane %v368, %v372
        %vm375 = vcmask 31744
        %v377 = vsel %vm375, %v304, 0
        %v380 = vsel %vm375, %v305, 0
        %v383 = vsel %vm375, %v306, 0
        %v386 = vsel %vm375, %v307, 0
        %v389 = vsel %vm375, %v308, 0
        %v392 = vsel %vm375, %v309, 0
        %v395 = vsel %vm375, %v310, 0
        %v398 = vsel %vm375, %v311, 0
        %v401 = vsel %vm375, %v312, 0
        %v404 = vsel %vm375, %v313, 0
        %v407 = vsel %vm375, %v314, 0
        %v410 = vsel %vm375, %v315, 0
        %v413 = vsel %vm375, %v316, 0
        %v416 = vsel %vm375, %v317, 0
        %v419 = vsel %vm375, %v318, 0
        %v422 = vsel %vm375, %v319, 0
        %v425 = vsel %vm375, %v320, 0
        %v428 = vsel %vm375, %v321, 0
        %v431 = vsel %vm375, %v322, 0
        %v434 = vsel %vm375, %v323, 0
        %v437 = vsel %vm375, %v324, 0
        %v440 = vsel %vm375, %v325, 0
        %v443 = vsel %vm375, %v326, 0
        %v446 = vsel %vm375, %v327, 0
        %v449 = vsel %vm375, %v328, 0
        %v452 = vsel %vm375, %v329, 0
        %v455 = vsel %vm375, %v330, 0
        %v458 = vsel %vm375, %v331, 0
        %v461 = vsel %vm375, %v332, 0
        %v464 = vsel %vm375, %v333, 0
        %v467 = vsel %vm375, %v334, 0
        %v470 = vsel %vm375, %v335, 0
        %v473 = vsel %vm375, %v336, 0
        %v476 = vsel %vm375, %v337, 0
        %v479 = vsel %vm375, %v338, 0
        %v482 = vsel %vm375, %v339, 0
        %v485 = vsel %vm375, %v340, 0
        %v488 = vsel %vm375, %v341, 0
        %v491 = vsel %vm375, %v342, 0
        %v494 = vsel %vm375, %v343, 0
        %v497 = vsel %vm375, %v344, 0
        %v500 = vsel %vm375, %v345, 0
        %v503 = vsel %vm375, %v346, 0
        %v506 = vsel %vm375, %v347, 0
        %v509 = vsel %vm375, %v348, 0
        %v512 = vsel %vm375, %v349, 0
        %v515 = vsel %vm375, %v350, 0
        %v518 = vsel %vm375, %v351, 0
        %v521 = vsel %vm375, %v352, 0
        %v524 = vsel %vm375, %v353, 0
        %v527 = vsel %vm375, %v354, 0
        %v530 = vsel %vm375, %v355, 0
        %v533 = vsel %vm375, %v356, 0
        %v536 = vsel %vm375, %v357, 0
        %v539 = vsel %vm375, %v358, 0
        %v542 = vsel %vm375, %v359, 0
        %v545 = vsel %vm375, %v360, 0
        %v548 = vsel %vm375, %v361, 0
        %v551 = vsel %vm375, %v362, 0
        %v554 = vsel %vm375, %v363, 0
        %v557 = vsel %vm375, %v364, 0
        %v560 = vsel %vm375, %v365, 0
        %v563 = vsel %vm375, %v366, 0
        %vm565 = vcmask 1043456
        %v567 = vsel %vm565, %v367, 0
        %569 = vmatprep.subr.mxu0 0.0
        %570 = vmatpush1.msra.mxu0 %v567
        %571 = vmatprep.subr.mxu0 0.0
        %572 = vmatpush1.msra.mxu0 0.0
        %573 = vmatprep.subr.mxu0 0.0
        %574 = vmatpush1.msra.mxu0 0.0
        %575 = vmatprep.subr.mxu0 0.0
        %576 = vmatpush1.msra.mxu0 0.0
        %577 = vmatprep.subr.mxu0 0.0
        %578 = vmatpush1.msra.mxu0 0.0
        %579 = vmatprep.subr.mxu0 0.0
        %580 = vmatpush1.msra.mxu0 0.0
        %581 = vmatprep.subr.mxu0 0.0
        %582 = vmatpush1.msra.mxu0 0.0
        %583 = vmatprep.subr.mxu0 0.0
        %584 = vmatpush1.msra.mxu0 0.0
        %585 = vmatprep.subr.mxu0 0.0
        %586 = vmatpush1.msra.mxu0 0.0
        %587 = vmatprep.subr.mxu0 0.0
        %588 = vmatpush1.msra.mxu0 0.0
        %589 = vmatprep.subr.mxu0 0.0
        %590 = vmatpush1.msra.mxu0 0.0
        %591 = vmatprep.subr.mxu0 0.0
        %592 = vmatpush1.msra.mxu0 0.0
        %593 = vmatprep.subr.mxu0 0.0
        %594 = vmatpush1.msra.mxu0 0.0
        %595 = vmatprep.subr.mxu0 0.0
        %596 = vmatpush1.msra.mxu0 0.0
        %597 = vmatprep.subr.mxu0 0.0
        %598 = vmatpush1.msra.mxu0 0.0
        %599 = vmatprep.subr.mxu0 0.0
        %600 = vmatpush1.msra.mxu0 0.0
        %601 = vmatprep.subr.mxu0 0.0
        %602 = vmatpush1.msra.mxu0 0.0
        %603 = vmatprep.subr.mxu0 0.0
        %604 = vmatpush1.msra.mxu0 0.0
        %605 = vmatprep.subr.mxu0 0.0
        %606 = vmatpush1.msra.mxu0 0.0
        %607 = vmatprep.subr.mxu0 0.0
        %608 = vmatpush1.msra.mxu0 0.0
        %609 = vmatprep.subr.mxu0 0.0
        %610 = vmatpush1.msra.mxu0 0.0
        %611 = vmatprep.subr.mxu0 0.0
        %612 = vmatpush1.msra.mxu0 0.0
        %613 = vmatprep.subr.mxu0 0.0
        %614 = vmatpush1.msra.mxu0 0.0
        %615 = vmatprep.subr.mxu0 0.0
        %616 = vmatpush1.msra.mxu0 0.0
        %617 = vmatprep.subr.mxu0 0.0
        %618 = vmatpush1.msra.mxu0 0.0
        %619 = vmatprep.subr.mxu0 0.0
        %620 = vmatpush1.msra.mxu0 0.0
        %621 = vmatprep.subr.mxu0 0.0
        %622 = vmatpush1.msra.mxu0 0.0
        %623 = vmatprep.subr.mxu0 0.0
        %624 = vmatpush1.msra.mxu0 0.0
        %625 = vmatprep.subr.mxu0 0.0
        %626 = vmatpush1.msra.mxu0 0.0
        %627 = vmatprep.subr.mxu0 0.0
        %628 = vmatpush1.msra.mxu0 0.0
        %629 = vmatprep.subr.mxu0 0.0
        %630 = vmatpush1.msra.mxu0 0.0
        %631 = vmatprep.subr.mxu0 0.0
        %632 = vmatpush1.msra.mxu0 0.0
        %633 = vmatprep.mubr.f32.mxu0 0.0
        %634 = vmatmul.mubr.f32.gmra.mrb[0].mxu0 %v377
        %v635 = vpop.f32.mrb[0].mxu0
        %v636 = vadd.f32 %v373, %v635
        %v637 = vpop.f32.mrb[0].mxu0
        %638 = vmatprep.mubr.f32.mxu0 0.0
        %639 = vmatmul.mubr.f32.gmra.mrb[0].mxu0 %v380
        %v640 = vpop.f32.mrb[0].mxu0
        %v641 = vadd.f32 %v373, %v640
        %v642 = vpop.f32.mrb[0].mxu0
        %643 = vmatprep.mubr.f32.mxu0 0.0
        %644 = vmatmul.mubr.f32.gmra.mrb[0].mxu0 %v383
        %v645 = vpop.f32.mrb[0].mxu0
        %v646 = vadd.f32 %v373, %v645
        %v647 = vpop.f32.mrb[0].mxu0
        %648 = vmatprep.mubr.f32.mxu0 0.0
        %649 = vmatmul.mubr.f32.gmra.mrb[0].mxu0 %v386
        %v650 = vpop.f32.mrb[0].mxu0
        %v651 = vadd.f32 %v373, %v650
        %v652 = vpop.f32.mrb[0].mxu0
        %653 = vmatprep.mubr.f32.mxu0 0.0
        %654 = vmatmul.mubr.f32.gmra.mrb[0].mxu0 %v389
        %v655 = vpop.f32.mrb[0].mxu0
        %v656 = vadd.f32 %v373, %v655
        %v657 = vpop.f32.mrb[0].mxu0
        %658 = vmatprep.mubr.f32.mxu0 0.0
        %659 = vmatmul.mubr.f32.gmra.mrb[0].mxu0 %v392
        %v660 = vpop.f32.mrb[0].mxu0
        %v661 = vadd.f32 %v373, %v660
        %v662 = vpop.f32.mrb[0].mxu0
        %663 = vmatprep.mubr.f32.mxu0 0.0
        %664 = vmatmul.mubr.f32.gmra.mrb[0].mxu0 %v395
        %v665 = vpop.f32.mrb[0].mxu0
        %v666 = vadd.f32 %v373, %v665
        %v667 = vpop.f32.mrb[0].mxu0
        %668 = vmatprep.mubr.f32.mxu0 0.0
        %669 = vmatmul.mubr.f32.gmra.mrb[0].mxu0 %v398
        %v670 = vpop.f32.mrb[0].mxu0
        %v671 = vadd.f32 %v373, %v670
        %v672 = vpop.f32.mrb[0].mxu0
        %673 = vmatprep.mubr.f32.mxu0 0.0
        %674 = vmatmul.mubr.f32.gmra.mrb[0].mxu0 %v401
        %v675 = vpop.f32.mrb[0].mxu0
        %v676 = vadd.f32 %v373, %v675
        %v677 = vpop.f32.mrb[0].mxu0
        %678 = vmatprep.mubr.f32.mxu0 0.0
        %679 = vmatmul.mubr.f32.gmra.mrb[0].mxu0 %v404
        %v680 = vpop.f32.mrb[0].mxu0
        %v681 = vadd.f32 %v373, %v680
        %v682 = vpop.f32.mrb[0].mxu0
        %683 = vmatprep.mubr.f32.mxu0 0.0
        %684 = vmatmul.mubr.f32.gmra.mrb[0].mxu0 %v407
        %v685 = vpop.f32.mrb[0].mxu0
        %v686 = vadd.f32 %v373, %v685
        %v687 = vpop.f32.mrb[0].mxu0
        %688 = vmatprep.mubr.f32.mxu0 0.0
        %689 = vmatmul.mubr.f32.gmra.mrb[0].mxu0 %v410
        %v690 = vpop.f32.mrb[0].mxu0
        %v691 = vadd.f32 %v373, %v690
        %v692 = vpop.f32.mrb[0].mxu0
        %693 = vmatprep.mubr.f32.mxu0 0.0
        %694 = vmatmul.mubr.f32.gmra.mrb[0].mxu0 %v413
        %v695 = vpop.f32.mrb[0].mxu0
        %v696 = vadd.f32 %v373, %v695
        %v697 = vpop.f32.mrb[0].mxu0
        %698 = vmatprep.mubr.f32.mxu0 0.0
        %699 = vmatmul.mubr.f32.gmra.mrb[0].mxu0 %v416
        %v700 = vpop.f32.mrb[0].mxu0
        %v701 = vadd.f32 %v373, %v700
        %v702 = vpop.f32.mrb[0].mxu0
        %703 = vmatprep.mubr.f32.mxu0 0.0
        %704 = vmatmul.mubr.f32.gmra.mrb[0].mxu0 %v419
        %v705 = vpop.f32.mrb[0].mxu0
        %v706 = vadd.f32 %v373, %v705
        %v707 = vpop.f32.mrb[0].mxu0
        %708 = vmatprep.mubr.f32.mxu0 0.0
        %709 = vmatmul.mubr.f32.gmra.mrb[0].mxu0 %v422
        %v710 = vpop.f32.mrb[0].mxu0
        %v711 = vadd.f32 %v373, %v710
        %v712 = vpop.f32.mrb[0].mxu0
        %713 = vmatprep.mubr.f32.mxu0 0.0
        %714 = vmatmul.mubr.f32.gmra.mrb[0].mxu0 %v425
        %v715 = vpop.f32.mrb[0].mxu0
        %v716 = vadd.f32 %v373, %v715
        %v717 = vpop.f32.mrb[0].mxu0
        %718 = vmatprep.mubr.f32.mxu0 0.0
        %719 = vmatmul.mubr.f32.gmra.mrb[0].mxu0 %v428
        %v720 = vpop.f32.mrb[0].mxu0
        %v721 = vadd.f32 %v373, %v720
        %v722 = vpop.f32.mrb[0].mxu0
        %723 = vmatprep.mubr.f32.mxu0 0.0
        %724 = vmatmul.mubr.f32.gmra.mrb[0].mxu0 %v431
        %v725 = vpop.f32.mrb[0].mxu0
        %v726 = vadd.f32 %v373, %v725
        %v727 = vpop.f32.mrb[0].mxu0
        %728 = vmatprep.mubr.f32.mxu0 0.0
        %729 = vmatmul.mubr.f32.gmra.mrb[0].mxu0 %v434
        %v730 = vpop.f32.mrb[0].mxu0
        %v731 = vadd.f32 %v373, %v730
        %v732 = vpop.f32.mrb[0].mxu0
        %733 = vmatprep.mubr.f32.mxu0 0.0
        %734 = vmatmul.mubr.f32.gmra.mrb[0].mxu0 %v437
        %v735 = vpop.f32.mrb[0].mxu0
        %v736 = vadd.f32 %v373, %v735
        %v737 = vpop.f32.mrb[0].mxu0
        %738 = vmatprep.mubr.f32.mxu0 0.0
        %739 = vmatmul.mubr.f32.gmra.mrb[0].mxu0 %v440
        %v740 = vpop.f32.mrb[0].mxu0
        %v741 = vadd.f32 %v373, %v740
        %v742 = vpop.f32.mrb[0].mxu0
        %743 = vmatprep.mubr.f32.mxu0 0.0
        %744 = vmatmul.mubr.f32.gmra.mrb[0].mxu0 %v443
        %v745 = vpop.f32.mrb[0].mxu0
        %v746 = vadd.f32 %v373, %v745
        %v747 = vpop.f32.mrb[0].mxu0
        %748 = vmatprep.mubr.f32.mxu0 0.0
        %749 = vmatmul.mubr.f32.gmra.mrb[0].mxu0 %v446
        %v750 = vpop.f32.mrb[0].mxu0
        %v751 = vadd.f32 %v373, %v750
        %v752 = vpop.f32.mrb[0].mxu0
        %753 = vmatprep.mubr.f32.mxu0 0.0
        %754 = vmatmul.mubr.f32.gmra.mrb[0].mxu0 %v449
        %v755 = vpop.f32.mrb[0].mxu0
        %v756 = vadd.f32 %v373, %v755
        %v757 = vpop.f32.mrb[0].mxu0
        %758 = vmatprep.mubr.f32.mxu0 0.0
        %759 = vmatmul.mubr.f32.gmra.mrb[0].mxu0 %v452
        %v760 = vpop.f32.mrb[0].mxu0
        %v761 = vadd.f32 %v373, %v760
        %v762 = vpop.f32.mrb[0].mxu0
        %763 = vmatprep.mubr.f32.mxu0 0.0
        %764 = vmatmul.mubr.f32.gmra.mrb[0].mxu0 %v455
        %v765 = vpop.f32.mrb[0].mxu0
        %v766 = vadd.f32 %v373, %v765
        %v767 = vpop.f32.mrb[0].mxu0
        %768 = vmatprep.mubr.f32.mxu0 0.0
        %769 = vmatmul.mubr.f32.gmra.mrb[0].mxu0 %v458
        %v770 = vpop.f32.mrb[0].mxu0
        %v771 = vadd.f32 %v373, %v770
        %v772 = vpop.f32.mrb[0].mxu0
        %773 = vmatprep.mubr.f32.mxu0 0.0
        %774 = vmatmul.mubr.f32.gmra.mrb[0].mxu0 %v461
        %v775 = vpop.f32.mrb[0].mxu0
        %v776 = vadd.f32 %v373, %v775
        %v777 = vpop.f32.mrb[0].mxu0
        %778 = vmatprep.mubr.f32.mxu0 0.0
        %779 = vmatmul.mubr.f32.gmra.mrb[0].mxu0 %v464
        %v780 = vpop.f32.mrb[0].mxu0
        %v781 = vadd.f32 %v373, %v780
        %v782 = vpop.f32.mrb[0].mxu0
        %783 = vmatprep.mubr.f32.mxu0 0.0
        %784 = vmatmul.mubr.f32.gmra.mrb[0].mxu0 %v467
        %v785 = vpop.f32.mrb[0].mxu0
        %v786 = vadd.f32 %v373, %v785
        %v787 = vpop.f32.mrb[0].mxu0
        %788 = vmatprep.mubr.f32.mxu0 0.0
        %789 = vmatmul.mubr.f32.gmra.mrb[0].mxu0 %v470
        %v790 = vpop.f32.mrb[0].mxu0
        %v791 = vadd.f32 %v373, %v790
        %v792 = vpop.f32.mrb[0].mxu0
        %793 = vmatprep.mubr.f32.mxu0 0.0
        %794 = vmatmul.mubr.f32.gmra.mrb[0].mxu0 %v473
        %v795 = vpop.f32.mrb[0].mxu0
        %v796 = vadd.f32 %v373, %v795
        %v797 = vpop.f32.mrb[0].mxu0
        %798 = vmatprep.mubr.f32.mxu0 0.0
        %799 = vmatmul.mubr.f32.gmra.mrb[0].mxu0 %v476
        %v800 = vpop.f32.mrb[0].mxu0
        %v801 = vadd.f32 %v373, %v800
        %v802 = vpop.f32.mrb[0].mxu0
        %803 = vmatprep.mubr.f32.mxu0 0.0
        %804 = vmatmul.mubr.f32.gmra.mrb[0].mxu0 %v479
        %v805 = vpop.f32.mrb[0].mxu0
        %v806 = vadd.f32 %v373, %v805
        %v807 = vpop.f32.mrb[0].mxu0
        %808 = vmatprep.mubr.f32.mxu0 0.0
        %809 = vmatmul.mubr.f32.gmra.mrb[0].mxu0 %v482
        %v810 = vpop.f32.mrb[0].mxu0
        %v811 = vadd.f32 %v373, %v810
        %v812 = vpop.f32.mrb[0].mxu0
        %813 = vmatprep.mubr.f32.mxu0 0.0
        %814 = vmatmul.mubr.f32.gmra.mrb[0].mxu0 %v485
        %v815 = vpop.f32.mrb[0].mxu0
        %v816 = vadd.f32 %v373, %v815
        %v817 = vpop.f32.mrb[0].mxu0
        %818 = vmatprep.mubr.f32.mxu0 0.0
        %819 = vmatmul.mubr.f32.gmra.mrb[0].mxu0 %v488
        %v820 = vpop.f32.mrb[0].mxu0
        %v821 = vadd.f32 %v373, %v820
        %v822 = vpop.f32.mrb[0].mxu0
        %823 = vmatprep.mubr.f32.mxu0 0.0
        %824 = vmatmul.mubr.f32.gmra.mrb[0].mxu0 %v491
        %v825 = vpop.f32.mrb[0].mxu0
        %v826 = vadd.f32 %v373, %v825
        %v827 = vpop.f32.mrb[0].mxu0
        %828 = vmatprep.mubr.f32.mxu0 0.0
        %829 = vmatmul.mubr.f32.gmra.mrb[0].mxu0 %v494
        %v830 = vpop.f32.mrb[0].mxu0
        %v831 = vadd.f32 %v373, %v830
        %v832 = vpop.f32.mrb[0].mxu0
        %833 = vmatprep.mubr.f32.mxu0 0.0
        %834 = vmatmul.mubr.f32.gmra.mrb[0].mxu0 %v497
        %v835 = vpop.f32.mrb[0].mxu0
        %v836 = vadd.f32 %v373, %v835
        %v837 = vpop.f32.mrb[0].mxu0
        %838 = vmatprep.mubr.f32.mxu0 0.0
        %839 = vmatmul.mubr.f32.gmra.mrb[0].mxu0 %v500
        %v840 = vpop.f32.mrb[0].mxu0
        %v841 = vadd.f32 %v373, %v840
        %v842 = vpop.f32.mrb[0].mxu0
        %843 = vmatprep.mubr.f32.mxu0 0.0
        %844 = vmatmul.mubr.f32.gmra.mrb[0].mxu0 %v503
        %v845 = vpop.f32.mrb[0].mxu0
        %v846 = vadd.f32 %v373, %v845
        %v847 = vpop.f32.mrb[0].mxu0
        %848 = vmatprep.mubr.f32.mxu0 0.0
        %849 = vmatmul.mubr.f32.gmra.mrb[0].mxu0 %v506
        %v850 = vpop.f32.mrb[0].mxu0
        %v851 = vadd.f32 %v373, %v850
        %v852 = vpop.f32.mrb[0].mxu0
        %853 = vmatprep.mubr.f32.mxu0 0.0
        %854 = vmatmul.mubr.f32.gmra.mrb[0].mxu0 %v509
        %v855 = vpop.f32.mrb[0].mxu0
        %v856 = vadd.f32 %v373, %v855
        %v857 = vpop.f32.mrb[0].mxu0
        %858 = vmatprep.mubr.f32.mxu0 0.0
        %859 = vmatmul.mubr.f32.gmra.mrb[0].mxu0 %v512
        %v860 = vpop.f32.mrb[0].mxu0
        %v861 = vadd.f32 %v373, %v860
        %v862 = vpop.f32.mrb[0].mxu0
        %863 = vmatprep.mubr.f32.mxu0 0.0
        %864 = vmatmul.mubr.f32.gmra.mrb[0].mxu0 %v515
        %v865 = vpop.f32.mrb[0].mxu0
        %v866 = vadd.f32 %v373, %v865
        %v867 = vpop.f32.mrb[0].mxu0
        %868 = vmatprep.mubr.f32.mxu0 0.0
        %869 = vmatmul.mubr.f32.gmra.mrb[0].mxu0 %v518
        %v870 = vpop.f32.mrb[0].mxu0
        %v871 = vadd.f32 %v373, %v870
        %v872 = vpop.f32.mrb[0].mxu0
        %873 = vmatprep.mubr.f32.mxu0 0.0
        %874 = vmatmul.mubr.f32.gmra.mrb[0].mxu0 %v521
        %v875 = vpop.f32.mrb[0].mxu0
        %v876 = vadd.f32 %v373, %v875
        %v877 = vpop.f32.mrb[0].mxu0
        %878 = vmatprep.mubr.f32.mxu0 0.0
        %879 = vmatmul.mubr.f32.gmra.mrb[0].mxu0 %v524
        %v880 = vpop.f32.mrb[0].mxu0
        %v881 = vadd.f32 %v373, %v880
        %v882 = vpop.f32.mrb[0].mxu0
        %883 = vmatprep.mubr.f32.mxu0 0.0
        %884 = vmatmul.mubr.f32.gmra.mrb[0].mxu0 %v527
        %v885 = vpop.f32.mrb[0].mxu0
        %v886 = vadd.f32 %v373, %v885
        %v887 = vpop.f32.mrb[0].mxu0
        %888 = vmatprep.mubr.f32.mxu0 0.0
        %889 = vmatmul.mubr.f32.gmra.mrb[0].mxu0 %v530
        %v890 = vpop.f32.mrb[0].mxu0
        %v891 = vadd.f32 %v373, %v890
        %v892 = vpop.f32.mrb[0].mxu0
        %893 = vmatprep.mubr.f32.mxu0 0.0
        %894 = vmatmul.mubr.f32.gmra.mrb[0].mxu0 %v533
        %v895 = vpop.f32.mrb[0].mxu0
        %v896 = vadd.f32 %v373, %v895
        %v897 = vpop.f32.mrb[0].mxu0
        %898 = vmatprep.mubr.f32.mxu0 0.0
        %899 = vmatmul.mubr.f32.gmra.mrb[0].mxu0 %v536
        %v900 = vpop.f32.mrb[0].mxu0
        %v901 = vadd.f32 %v373, %v900
        %v902 = vpop.f32.mrb[0].mxu0
        %903 = vmatprep.mubr.f32.mxu0 0.0
        %904 = vmatmul.mubr.f32.gmra.mrb[0].mxu0 %v539
        %v905 = vpop.f32.mrb[0].mxu0
        %v906 = vadd.f32 %v373, %v905
        %v907 = vpop.f32.mrb[0].mxu0
        %908 = vmatprep.mubr.f32.mxu0 0.0
        %909 = vmatmul.mubr.f32.gmra.mrb[0].mxu0 %v542
        %v910 = vpop.f32.mrb[0].mxu0
        %v911 = vadd.f32 %v373, %v910
        %v912 = vpop.f32.mrb[0].mxu0
        %913 = vmatprep.mubr.f32.mxu0 0.0
        %914 = vmatmul.mubr.f32.gmra.mrb[0].mxu0 %v545
        %v915 = vpop.f32.mrb[0].mxu0
        %v916 = vadd.f32 %v373, %v915
        %v917 = vpop.f32.mrb[0].mxu0
        %918 = vmatprep.mubr.f32.mxu0 0.0
        %919 = vmatmul.mubr.f32.gmra.mrb[0].mxu0 %v548
        %v920 = vpop.f32.mrb[0].mxu0
        %v921 = vadd.f32 %v373, %v920
        %v922 = vpop.f32.mrb[0].mxu0
        %923 = vmatprep.mubr.f32.mxu0 0.0
        %924 = vmatmul.mubr.f32.gmra.mrb[0].mxu0 %v551
        %v925 = vpop.f32.mrb[0].mxu0
        %v926 = vadd.f32 %v373, %v925
        %v927 = vpop.f32.mrb[0].mxu0
        %928 = vmatprep.mubr.f32.mxu0 0.0
        %929 = vmatmul.mubr.f32.gmra.mrb[0].mxu0 %v554
        %v930 = vpop.f32.mrb[0].mxu0
        %v931 = vadd.f32 %v373, %v930
        %v932 = vpop.f32.mrb[0].mxu0
        %933 = vmatprep.mubr.f32.mxu0 0.0
        %934 = vmatmul.mubr.f32.gmra.mrb[0].mxu0 %v557
        %v935 = vpop.f32.mrb[0].mxu0
        %v936 = vadd.f32 %v373, %v935
        %v937 = vpop.f32.mrb[0].mxu0
        %938 = vmatprep.mubr.f32.mxu0 0.0
        %939 = vmatmul.mubr.f32.gmra.mrb[0].mxu0 %v560
        %v940 = vpop.f32.mrb[0].mxu0
        %v941 = vadd.f32 %v373, %v940
        %v942 = vpop.f32.mrb[0].mxu0
        %943 = vmatprep.mubr.f32.mxu0 0.0
        %944 = vmatmul.mubr.f32.gmra.mrb[0].mxu0 %v563
        %v945 = vpop.f32.mrb[0].mxu0
        %v946 = vadd.f32 %v373, %v945
        %v947 = vpop.f32.mrb[0].mxu0
        %948 = vdwg.mxu0
        %v949 = vtanh.pop %v636
        %v950 = vtanh.pop %v641
        %v951 = vtanh.pop %v646
        %v952 = vtanh.pop %v651
        %v953 = vtanh.pop %v656
        %v954 = vtanh.pop %v661
        %v955 = vtanh.pop %v666
        %v956 = vtanh.pop %v671
        %v957 = vtanh.pop %v676
        %v958 = vtanh.pop %v681
        %v959 = vtanh.pop %v686
        %v960 = vtanh.pop %v691
        %v961 = vtanh.pop %v696
        %v962 = vtanh.pop %v701
        %v963 = vtanh.pop %v706
        %v964 = vtanh.pop %v711
        %v965 = vtanh.pop %v716
        %v966 = vtanh.pop %v721
        %v967 = vtanh.pop %v726
        %v968 = vtanh.pop %v731
        %v969 = vtanh.pop %v736
        %v970 = vtanh.pop %v741
        %v971 = vtanh.pop %v746
        %v972 = vtanh.pop %v751
        %v973 = vtanh.pop %v756
        %v974 = vtanh.pop %v761
        %v975 = vtanh.pop %v766
        %v976 = vtanh.pop %v771
        %v977 = vtanh.pop %v776
        %v978 = vtanh.pop %v781
        %v979 = vtanh.pop %v786
        %v980 = vtanh.pop %v791
        %v981 = vtanh.pop %v796
        %v982 = vtanh.pop %v801
        %v983 = vtanh.pop %v806
        %v984 = vtanh.pop %v811
        %v985 = vtanh.pop %v816
        %v986 = vtanh.pop %v821
        %v987 = vtanh.pop %v826
        %v988 = vtanh.pop %v831
        %v989 = vtanh.pop %v836
        %v990 = vtanh.pop %v841
        %v991 = vtanh.pop %v846
        %v992 = vtanh.pop %v851
        %v993 = vtanh.pop %v856
        %v994 = vtanh.pop %v861
        %v995 = vtanh.pop %v866
        %v996 = vtanh.pop %v871
        %v997 = vtanh.pop %v876
        %v998 = vtanh.pop %v881
        %v999 = vtanh.pop %v886
        %v1000 = vtanh.pop %v891
        %v1001 = vtanh.pop %v896
        %v1002 = vtanh.pop %v901
        %v1003 = vtanh.pop %v906
        %v1004 = vtanh.pop %v911
        %v1005 = vtanh.pop %v916
        %v1006 = vtanh.pop %v921
        %v1007 = vtanh.pop %v926
        %v1008 = vtanh.pop %v931
        %v1009 = vtanh.pop %v936
        %v1010 = vtanh.pop %v941
        %v1011 = vtanh.pop %v946
        %v1012 = vld [vmem:[%s3] sm:$0xff]
        %v1013 = vld [vmem:[%s3 + $0x8] sm:$0xff]
        %v1014 = vld [vmem:[%s3 + $0x10] sm:$0xff]
        %v1015 = vld [vmem:[%s3 + $0x18] sm:$0xff]
        %v1016 = vld [vmem:[%s3 + $0x20] sm:$0xff]
        %v1017 = vld [vmem:[%s3 + $0x28] sm:$0xff]
        %v1018 = vld [vmem:[%s3 + $0x30] sm:$0xff]
        %v1019 = vld [vmem:[%s3 + $0x38] sm:$0xff]
        %v1020 = vld [vmem:[%s3 + $0x40] sm:$0xff]
        %v1021 = vld [vmem:[%s3 + $0x48] sm:$0xff]
        %v1022 = vld [vmem:[%s3 + $0x50] sm:$0xff]
        %v1023 = vld [vmem:[%s3 + $0x58] sm:$0xff]
        %v1024 = vld [vmem:[%s3 + $0x60] sm:$0xff]
        %v1025 = vld [vmem:[%s3 + $0x68] sm:$0xff]
        %v1026 = vld [vmem:[%s3 + $0x70] sm:$0xff]
        %v1027 = vld [vmem:[%s3 + $0x78] sm:$0xff]
        %v1028 = vld [vmem:[%s4] sm:$0x1]
        %v1030 = vlaneseq
        %v1031 = vshrl.u32 %v1030, 7
        %v1032 = vsub.s32 0, %v1031
        %v1033 = vrot.slane %v1028, %v1032
        %1035 = vmatprep.subr.mxu0 0.0
        %1036 = vmatpush1.msra.mxu0 %v1012
        %1037 = vmatprep.subr.mxu0 0.0
        %1038 = vmatpush1.msra.mxu0 %v1013
        %1039 = vmatprep.subr.mxu0 0.0
        %1040 = vmatpush1.msra.mxu0 %v1014
        %1041 = vmatprep.subr.mxu0 0.0
        %1042 = vmatpush1.msra.mxu0 %v1015
        %1043 = vmatprep.subr.mxu0 0.0
        %1044 = vmatpush1.msra.mxu0 %v1016
        %1045 = vmatprep.subr.mxu0 0.0
        %1046 = vmatpush1.msra.mxu0 %v1017
        %1047 = vmatprep.subr.mxu0 0.0
        %1048 = vmatpush1.msra.mxu0 %v1018
        %1049 = vmatprep.subr.mxu0 0.0
        %1050 = vmatpush1.msra.mxu0 %v1019
        %1051 = vmatprep.subr.mxu0 0.0
        %1052 = vmatpush1.msra.mxu0 %v1020
        %1053 = vmatprep.subr.mxu0 0.0
        %1054 = vmatpush1.msra.mxu0 %v1021
        %1055 = vmatprep.subr.mxu0 0.0
        %1056 = vmatpush1.msra.mxu0 %v1022
        %1057 = vmatprep.subr.mxu0 0.0
        %1058 = vmatpush1.msra.mxu0 %v1023
        %1059 = vmatprep.subr.mxu0 0.0
        %1060 = vmatpush1.msra.mxu0 %v1024
        %1061 = vmatprep.subr.mxu0 0.0
        %1062 = vmatpush1.msra.mxu0 %v1025
        %1063 = vmatprep.subr.mxu0 0.0
        %1064 = vmatpush1.msra.mxu0 %v1026
        %1065 = vmatprep.subr.mxu0 0.0
        %1066 = vmatpush1.msra.mxu0 %v1027
        %1067 = vmatprep.subr.mxu0 0.0
        %1068 = vmatpush1.msra.mxu0 0.0
        %1069 = vmatprep.subr.mxu0 0.0
        %1070 = vmatpush1.msra.mxu0 0.0
        %1071 = vmatprep.subr.mxu0 0.0
        %1072 = vmatpush1.msra.mxu0 0.0
        %1073 = vmatprep.subr.mxu0 0.0
        %1074 = vmatpush1.msra.mxu0 0.0
        %1075 = vmatprep.subr.mxu0 0.0
        %1076 = vmatpush1.msra.mxu0 0.0
        %1077 = vmatprep.subr.mxu0 0.0
        %1078 = vmatpush1.msra.mxu0 0.0
        %1079 = vmatprep.subr.mxu0 0.0
        %1080 = vmatpush1.msra.mxu0 0.0
        %1081 = vmatprep.subr.mxu0 0.0
        %1082 = vmatpush1.msra.mxu0 0.0
        %1083 = vmatprep.subr.mxu0 0.0
        %1084 = vmatpush1.msra.mxu0 0.0
        %1085 = vmatprep.subr.mxu0 0.0
        %1086 = vmatpush1.msra.mxu0 0.0
        %1087 = vmatprep.subr.mxu0 0.0
        %1088 = vmatpush1.msra.mxu0 0.0
        %1089 = vmatprep.subr.mxu0 0.0
        %1090 = vmatpush1.msra.mxu0 0.0
        %1091 = vmatprep.subr.mxu0 0.0
        %1092 = vmatpush1.msra.mxu0 0.0
        %1093 = vmatprep.subr.mxu0 0.0
        %1094 = vmatpush1.msra.mxu0 0.0
        %1095 = vmatprep.subr.mxu0 0.0
        %1096 = vmatpush1.msra.mxu0 0.0
        %1097 = vmatprep.subr.mxu0 0.0
        %1098 = vmatpush1.msra.mxu0 0.0
        %1099 = vmatprep.mubr.f32.mxu0 0.0
        %1100 = vmatmul.mubr.f32.gmra.mrb[0].mxu0 %v949
        %v1101 = vpop.f32.mrb[0].mxu0
        %v1102 = vadd.f32 %v1033, %v1101
        %v1103 = vpop.f32.mrb[0].mxu0
        %1104 = vmatprep.mubr.f32.mxu0 0.0
        %1105 = vmatmul.mubr.f32.gmra.mrb[0].mxu0 %v950
        %v1106 = vpop.f32.mrb[0].mxu0
        %v1107 = vadd.f32 %v1033, %v1106
        %v1108 = vpop.f32.mrb[0].mxu0
        %1109 = vmatprep.mubr.f32.mxu0 0.0
        %1110 = vmatmul.mubr.f32.gmra.mrb[0].mxu0 %v951
        %v1111 = vpop.f32.mrb[0].mxu0
        %v1112 = vadd.f32 %v1033, %v1111
        %v1113 = vpop.f32.mrb[0].mxu0
        %1114 = vmatprep.mubr.f32.mxu0 0.0
        %1115 = vmatmul.mubr.f32.gmra.mrb[0].mxu0 %v952
        %v1116 = vpop.f32.mrb[0].mxu0
        %v1117 = vadd.f32 %v1033, %v1116
        %v1118 = vpop.f32.mrb[0].mxu0
        %1119 = vmatprep.mubr.f32.mxu0 0.0
        %1120 = vmatmul.mubr.f32.gmra.mrb[0].mxu0 %v953
        %v1121 = vpop.f32.mrb[0].mxu0
        %v1122 = vadd.f32 %v1033, %v1121
        %v1123 = vpop.f32.mrb[0].mxu0
        %1124 = vmatprep.mubr.f32.mxu0 0.0
        %1125 = vmatmul.mubr.f32.gmra.mrb[0].mxu0 %v954
        %v1126 = vpop.f32.mrb[0].mxu0
        %v1127 = vadd.f32 %v1033, %v1126
        %v1128 = vpop.f32.mrb[0].mxu0
        %1129 = vmatprep.mubr.f32.mxu0 0.0
        %1130 = vmatmul.mubr.f32.gmra.mrb[0].mxu0 %v955
        %v1131 = vpop.f32.mrb[0].mxu0
        %v1132 = vadd.f32 %v1033, %v1131
        %v1133 = vpop.f32.mrb[0].mxu0
        %1134 = vmatprep.mubr.f32.mxu0 0.0
        %1135 = vmatmul.mubr.f32.gmra.mrb[0].mxu0 %v956
        %v1136 = vpop.f32.mrb[0].mxu0
        %v1137 = vadd.f32 %v1033, %v1136
        %v1138 = vpop.f32.mrb[0].mxu0
        %1139 = vmatprep.mubr.f32.mxu0 0.0
        %1140 = vmatmul.mubr.f32.gmra.mrb[0].mxu0 %v957
        %v1141 = vpop.f32.mrb[0].mxu0
        %v1142 = vadd.f32 %v1033, %v1141
        %v1143 = vpop.f32.mrb[0].mxu0
        %1144 = vmatprep.mubr.f32.mxu0 0.0
        %1145 = vmatmul.mubr.f32.gmra.mrb[0].mxu0 %v958
        %v1146 = vpop.f32.mrb[0].mxu0
        %v1147 = vadd.f32 %v1033, %v1146
        %v1148 = vpop.f32.mrb[0].mxu0
        %1149 = vmatprep.mubr.f32.mxu0 0.0
        %1150 = vmatmul.mubr.f32.gmra.mrb[0].mxu0 %v959
        %v1151 = vpop.f32.mrb[0].mxu0
        %v1152 = vadd.f32 %v1033, %v1151
        %v1153 = vpop.f32.mrb[0].mxu0
        %1154 = vmatprep.mubr.f32.mxu0 0.0
        %1155 = vmatmul.mubr.f32.gmra.mrb[0].mxu0 %v960
        %v1156 = vpop.f32.mrb[0].mxu0
        %v1157 = vadd.f32 %v1033, %v1156
        %v1158 = vpop.f32.mrb[0].mxu0
        %1159 = vmatprep.mubr.f32.mxu0 0.0
        %1160 = vmatmul.mubr.f32.gmra.mrb[0].mxu0 %v961
        %v1161 = vpop.f32.mrb[0].mxu0
        %v1162 = vadd.f32 %v1033, %v1161
        %v1163 = vpop.f32.mrb[0].mxu0
        %1164 = vmatprep.mubr.f32.mxu0 0.0
        %1165 = vmatmul.mubr.f32.gmra.mrb[0].mxu0 %v962
        %v1166 = vpop.f32.mrb[0].mxu0
        %v1167 = vadd.f32 %v1033, %v1166
        %v1168 = vpop.f32.mrb[0].mxu0
        %1169 = vmatprep.mubr.f32.mxu0 0.0
        %1170 = vmatmul.mubr.f32.gmra.mrb[0].mxu0 %v963
        %v1171 = vpop.f32.mrb[0].mxu0
        %v1172 = vadd.f32 %v1033, %v1171
        %v1173 = vpop.f32.mrb[0].mxu0
        %1174 = vmatprep.mubr.f32.mxu0 0.0
        %1175 = vmatmul.mubr.f32.gmra.mrb[0].mxu0 %v964
        %v1176 = vpop.f32.mrb[0].mxu0
        %v1177 = vadd.f32 %v1033, %v1176
        %v1178 = vpop.f32.mrb[0].mxu0
        %1179 = vmatprep.mubr.f32.mxu0 0.0
        %1180 = vmatmul.mubr.f32.gmra.mrb[0].mxu0 %v965
        %v1181 = vpop.f32.mrb[0].mxu0
        %v1182 = vadd.f32 %v1033, %v1181
        %v1183 = vpop.f32.mrb[0].mxu0
        %1184 = vmatprep.mubr.f32.mxu0 0.0
        %1185 = vmatmul.mubr.f32.gmra.mrb[0].mxu0 %v966
        %v1186 = vpop.f32.mrb[0].mxu0
        %v1187 = vadd.f32 %v1033, %v1186
        %v1188 = vpop.f32.mrb[0].mxu0
        %1189 = vmatprep.mubr.f32.mxu0 0.0
        %1190 = vmatmul.mubr.f32.gmra.mrb[0].mxu0 %v967
        %v1191 = vpop.f32.mrb[0].mxu0
        %v1192 = vadd.f32 %v1033, %v1191
        %v1193 = vpop.f32.mrb[0].mxu0
        %1194 = vmatprep.mubr.f32.mxu0 0.0
        %1195 = vmatmul.mubr.f32.gmra.mrb[0].mxu0 %v968
        %v1196 = vpop.f32.mrb[0].mxu0
        %v1197 = vadd.f32 %v1033, %v1196
        %v1198 = vpop.f32.mrb[0].mxu0
        %1199 = vmatprep.mubr.f32.mxu0 0.0
        %1200 = vmatmul.mubr.f32.gmra.mrb[0].mxu0 %v969
        %v1201 = vpop.f32.mrb[0].mxu0
        %v1202 = vadd.f32 %v1033, %v1201
        %v1203 = vpop.f32.mrb[0].mxu0
        %1204 = vmatprep.mubr.f32.mxu0 0.0
        %1205 = vmatmul.mubr.f32.gmra.mrb[0].mxu0 %v970
        %v1206 = vpop.f32.mrb[0].mxu0
        %v1207 = vadd.f32 %v1033, %v1206
        %v1208 = vpop.f32.mrb[0].mxu0
        %1209 = vmatprep.mubr.f32.mxu0 0.0
        %1210 = vmatmul.mubr.f32.gmra.mrb[0].mxu0 %v971
        %v1211 = vpop.f32.mrb[0].mxu0
        %v1212 = vadd.f32 %v1033, %v1211
        %v1213 = vpop.f32.mrb[0].mxu0
        %1214 = vmatprep.mubr.f32.mxu0 0.0
        %1215 = vmatmul.mubr.f32.gmra.mrb[0].mxu0 %v972
        %v1216 = vpop.f32.mrb[0].mxu0
        %v1217 = vadd.f32 %v1033, %v1216
        %v1218 = vpop.f32.mrb[0].mxu0
        %1219 = vmatprep.mubr.f32.mxu0 0.0
        %1220 = vmatmul.mubr.f32.gmra.mrb[0].mxu0 %v973
        %v1221 = vpop.f32.mrb[0].mxu0
        %v1222 = vadd.f32 %v1033, %v1221
        %v1223 = vpop.f32.mrb[0].mxu0
        %1224 = vmatprep.mubr.f32.mxu0 0.0
        %1225 = vmatmul.mubr.f32.gmra.mrb[0].mxu0 %v974
        %v1226 = vpop.f32.mrb[0].mxu0
        %v1227 = vadd.f32 %v1033, %v1226
        %v1228 = vpop.f32.mrb[0].mxu0
        %1229 = vmatprep.mubr.f32.mxu0 0.0
        %1230 = vmatmul.mubr.f32.gmra.mrb[0].mxu0 %v975
        %v1231 = vpop.f32.mrb[0].mxu0
        %v1232 = vadd.f32 %v1033, %v1231
        %v1233 = vpop.f32.mrb[0].mxu0
        %1234 = vmatprep.mubr.f32.mxu0 0.0
        %1235 = vmatmul.mubr.f32.gmra.mrb[0].mxu0 %v976
        %v1236 = vpop.f32.mrb[0].mxu0
        %v1237 = vadd.f32 %v1033, %v1236
        %v1238 = vpop.f32.mrb[0].mxu0
        %1239 = vmatprep.mubr.f32.mxu0 0.0
        %1240 = vmatmul.mubr.f32.gmra.mrb[0].mxu0 %v977
        %v1241 = vpop.f32.mrb[0].mxu0
        %v1242 = vadd.f32 %v1033, %v1241
        %v1243 = vpop.f32.mrb[0].mxu0
        %1244 = vmatprep.mubr.f32.mxu0 0.0
        %1245 = vmatmul.mubr.f32.gmra.mrb[0].mxu0 %v978
        %v1246 = vpop.f32.mrb[0].mxu0
        %v1247 = vadd.f32 %v1033, %v1246
        %v1248 = vpop.f32.mrb[0].mxu0
        %1249 = vmatprep.mubr.f32.mxu0 0.0
        %1250 = vmatmul.mubr.f32.gmra.mrb[0].mxu0 %v979
        %v1251 = vpop.f32.mrb[0].mxu0
        %v1252 = vadd.f32 %v1033, %v1251
        %v1253 = vpop.f32.mrb[0].mxu0
        %1254 = vmatprep.mubr.f32.mxu0 0.0
        %1255 = vmatmul.mubr.f32.gmra.mrb[0].mxu0 %v980
        %v1256 = vpop.f32.mrb[0].mxu0
        %v1257 = vadd.f32 %v1033, %v1256
        %v1258 = vpop.f32.mrb[0].mxu0
        %1259 = vmatprep.mubr.f32.mxu0 0.0
        %1260 = vmatmul.mubr.f32.gmra.mrb[0].mxu0 %v981
        %v1261 = vpop.f32.mrb[0].mxu0
        %v1262 = vadd.f32 %v1033, %v1261
        %v1263 = vpop.f32.mrb[0].mxu0
        %1264 = vmatprep.mubr.f32.mxu0 0.0
        %1265 = vmatmul.mubr.f32.gmra.mrb[0].mxu0 %v982
        %v1266 = vpop.f32.mrb[0].mxu0
        %v1267 = vadd.f32 %v1033, %v1266
        %v1268 = vpop.f32.mrb[0].mxu0
        %1269 = vmatprep.mubr.f32.mxu0 0.0
        %1270 = vmatmul.mubr.f32.gmra.mrb[0].mxu0 %v983
        %v1271 = vpop.f32.mrb[0].mxu0
        %v1272 = vadd.f32 %v1033, %v1271
        %v1273 = vpop.f32.mrb[0].mxu0
        %1274 = vmatprep.mubr.f32.mxu0 0.0
        %1275 = vmatmul.mubr.f32.gmra.mrb[0].mxu0 %v984
        %v1276 = vpop.f32.mrb[0].mxu0
        %v1277 = vadd.f32 %v1033, %v1276
        %v1278 = vpop.f32.mrb[0].mxu0
        %1279 = vmatprep.mubr.f32.mxu0 0.0
        %1280 = vmatmul.mubr.f32.gmra.mrb[0].mxu0 %v985
        %v1281 = vpop.f32.mrb[0].mxu0
        %v1282 = vadd.f32 %v1033, %v1281
        %v1283 = vpop.f32.mrb[0].mxu0
        %1284 = vmatprep.mubr.f32.mxu0 0.0
        %1285 = vmatmul.mubr.f32.gmra.mrb[0].mxu0 %v986
        %v1286 = vpop.f32.mrb[0].mxu0
        %v1287 = vadd.f32 %v1033, %v1286
        %v1288 = vpop.f32.mrb[0].mxu0
        %1289 = vmatprep.mubr.f32.mxu0 0.0
        %1290 = vmatmul.mubr.f32.gmra.mrb[0].mxu0 %v987
        %v1291 = vpop.f32.mrb[0].mxu0
        %v1292 = vadd.f32 %v1033, %v1291
        %v1293 = vpop.f32.mrb[0].mxu0
        %1294 = vmatprep.mubr.f32.mxu0 0.0
        %1295 = vmatmul.mubr.f32.gmra.mrb[0].mxu0 %v988
        %v1296 = vpop.f32.mrb[0].mxu0
        %v1297 = vadd.f32 %v1033, %v1296
        %v1298 = vpop.f32.mrb[0].mxu0
        %1299 = vmatprep.mubr.f32.mxu0 0.0
        %1300 = vmatmul.mubr.f32.gmra.mrb[0].mxu0 %v989
        %v1301 = vpop.f32.mrb[0].mxu0
        %v1302 = vadd.f32 %v1033, %v1301
        %v1303 = vpop.f32.mrb[0].mxu0
        %1304 = vmatprep.mubr.f32.mxu0 0.0
        %1305 = vmatmul.mubr.f32.gmra.mrb[0].mxu0 %v990
        %v1306 = vpop.f32.mrb[0].mxu0
        %v1307 = vadd.f32 %v1033, %v1306
        %v1308 = vpop.f32.mrb[0].mxu0
        %1309 = vmatprep.mubr.f32.mxu0 0.0
        %1310 = vmatmul.mubr.f32.gmra.mrb[0].mxu0 %v991
        %v1311 = vpop.f32.mrb[0].mxu0
        %v1312 = vadd.f32 %v1033, %v1311
        %v1313 = vpop.f32.mrb[0].mxu0
        %1314 = vmatprep.mubr.f32.mxu0 0.0
        %1315 = vmatmul.mubr.f32.gmra.mrb[0].mxu0 %v992
        %v1316 = vpop.f32.mrb[0].mxu0
        %v1317 = vadd.f32 %v1033, %v1316
        %v1318 = vpop.f32.mrb[0].mxu0
        %1319 = vmatprep.mubr.f32.mxu0 0.0
        %1320 = vmatmul.mubr.f32.gmra.mrb[0].mxu0 %v993
        %v1321 = vpop.f32.mrb[0].mxu0
        %v1322 = vadd.f32 %v1033, %v1321
        %v1323 = vpop.f32.mrb[0].mxu0
        %1324 = vmatprep.mubr.f32.mxu0 0.0
        %1325 = vmatmul.mubr.f32.gmra.mrb[0].mxu0 %v994
        %v1326 = vpop.f32.mrb[0].mxu0
        %v1327 = vadd.f32 %v1033, %v1326
        %v1328 = vpop.f32.mrb[0].mxu0
        %1329 = vmatprep.mubr.f32.mxu0 0.0
        %1330 = vmatmul.mubr.f32.gmra.mrb[0].mxu0 %v995
        %v1331 = vpop.f32.mrb[0].mxu0
        %v1332 = vadd.f32 %v1033, %v1331
        %v1333 = vpop.f32.mrb[0].mxu0
        %1334 = vmatprep.mubr.f32.mxu0 0.0
        %1335 = vmatmul.mubr.f32.gmra.mrb[0].mxu0 %v996
        %v1336 = vpop.f32.mrb[0].mxu0
        %v1337 = vadd.f32 %v1033, %v1336
        %v1338 = vpop.f32.mrb[0].mxu0
        %1339 = vmatprep.mubr.f32.mxu0 0.0
        %1340 = vmatmul.mubr.f32.gmra.mrb[0].mxu0 %v997
        %v1341 = vpop.f32.mrb[0].mxu0
        %v1342 = vadd.f32 %v1033, %v1341
        %v1343 = vpop.f32.mrb[0].mxu0
        %1344 = vmatprep.mubr.f32.mxu0 0.0
        %1345 = vmatmul.mubr.f32.gmra.mrb[0].mxu0 %v998
        %v1346 = vpop.f32.mrb[0].mxu0
        %v1347 = vadd.f32 %v1033, %v1346
        %v1348 = vpop.f32.mrb[0].mxu0
        %1349 = vmatprep.mubr.f32.mxu0 0.0
        %1350 = vmatmul.mubr.f32.gmra.mrb[0].mxu0 %v999
        %v1351 = vpop.f32.mrb[0].mxu0
        %v1352 = vadd.f32 %v1033, %v1351
        %v1353 = vpop.f32.mrb[0].mxu0
        %1354 = vmatprep.mubr.f32.mxu0 0.0
        %1355 = vmatmul.mubr.f32.gmra.mrb[0].mxu0 %v1000
        %v1356 = vpop.f32.mrb[0].mxu0
        %v1357 = vadd.f32 %v1033, %v1356
        %v1358 = vpop.f32.mrb[0].mxu0
        %1359 = vmatprep.mubr.f32.mxu0 0.0
        %1360 = vmatmul.mubr.f32.gmra.mrb[0].mxu0 %v1001
        %v1361 = vpop.f32.mrb[0].mxu0
        %v1362 = vadd.f32 %v1033, %v1361
        %v1363 = vpop.f32.mrb[0].mxu0
        %1364 = vmatprep.mubr.f32.mxu0 0.0
        %1365 = vmatmul.mubr.f32.gmra.mrb[0].mxu0 %v1002
        %v1366 = vpop.f32.mrb[0].mxu0
        %v1367 = vadd.f32 %v1033, %v1366
        %v1368 = vpop.f32.mrb[0].mxu0
        %1369 = vmatprep.mubr.f32.mxu0 0.0
        %1370 = vmatmul.mubr.f32.gmra.mrb[0].mxu0 %v1003
        %v1371 = vpop.f32.mrb[0].mxu0
        %v1372 = vadd.f32 %v1033, %v1371
        %v1373 = vpop.f32.mrb[0].mxu0
        %1374 = vmatprep.mubr.f32.mxu0 0.0
        %1375 = vmatmul.mubr.f32.gmra.mrb[0].mxu0 %v1004
        %v1376 = vpop.f32.mrb[0].mxu0
        %v1377 = vadd.f32 %v1033, %v1376
        %v1378 = vpop.f32.mrb[0].mxu0
        %1379 = vmatprep.mubr.f32.mxu0 0.0
        %1380 = vmatmul.mubr.f32.gmra.mrb[0].mxu0 %v1005
        %v1381 = vpop.f32.mrb[0].mxu0
        %v1382 = vadd.f32 %v1033, %v1381
        %v1383 = vpop.f32.mrb[0].mxu0
        %1384 = vmatprep.mubr.f32.mxu0 0.0
        %1385 = vmatmul.mubr.f32.gmra.mrb[0].mxu0 %v1006
        %v1386 = vpop.f32.mrb[0].mxu0
        %v1387 = vadd.f32 %v1033, %v1386
        %v1388 = vpop.f32.mrb[0].mxu0
        %1389 = vmatprep.mubr.f32.mxu0 0.0
        %1390 = vmatmul.mubr.f32.gmra.mrb[0].mxu0 %v1007
        %v1391 = vpop.f32.mrb[0].mxu0
        %v1392 = vadd.f32 %v1033, %v1391
        %v1393 = vpop.f32.mrb[0].mxu0
        %1394 = vmatprep.mubr.f32.mxu0 0.0
        %1395 = vmatmul.mubr.f32.gmra.mrb[0].mxu0 %v1008
        %v1396 = vpop.f32.mrb[0].mxu0
        %v1397 = vadd.f32 %v1033, %v1396
        %v1398 = vpop.f32.mrb[0].mxu0
        %1399 = vmatprep.mubr.f32.mxu0 0.0
        %1400 = vmatmul.mubr.f32.gmra.mrb[0].mxu0 %v1009
        %v1401 = vpop.f32.mrb[0].mxu0
        %v1402 = vadd.f32 %v1033, %v1401
        %v1403 = vpop.f32.mrb[0].mxu0
        %1404 = vmatprep.mubr.f32.mxu0 0.0
        %1405 = vmatmul.mubr.f32.gmra.mrb[0].mxu0 %v1010
        %v1406 = vpop.f32.mrb[0].mxu0
        %v1407 = vadd.f32 %v1033, %v1406
        %v1408 = vpop.f32.mrb[0].mxu0
        %1409 = vmatprep.mubr.f32.mxu0 0.0
        %1410 = vmatmul.mubr.f32.gmra.mrb[0].mxu0 %v1011
        %v1411 = vpop.f32.mrb[0].mxu0
        %v1412 = vadd.f32 %v1033, %v1411
        %v1413 = vpop.f32.mrb[0].mxu0
        %1414 = vdwg.mxu0
        %v1415 = vtanh.pop %v1102
        %v1416 = vtanh.pop %v1107
        %v1417 = vtanh.pop %v1112
        %v1418 = vtanh.pop %v1117
        %v1419 = vtanh.pop %v1122
        %v1420 = vtanh.pop %v1127
        %v1421 = vtanh.pop %v1132
        %v1422 = vtanh.pop %v1137
        %v1423 = vtanh.pop %v1142
        %v1424 = vtanh.pop %v1147
        %v1425 = vtanh.pop %v1152
        %v1426 = vtanh.pop %v1157
        %v1427 = vtanh.pop %v1162
        %v1428 = vtanh.pop %v1167
        %v1429 = vtanh.pop %v1172
        %v1430 = vtanh.pop %v1177
        %v1431 = vtanh.pop %v1182
        %v1432 = vtanh.pop %v1187
        %v1433 = vtanh.pop %v1192
        %v1434 = vtanh.pop %v1197
        %v1435 = vtanh.pop %v1202
        %v1436 = vtanh.pop %v1207
        %v1437 = vtanh.pop %v1212
        %v1438 = vtanh.pop %v1217
        %v1439 = vtanh.pop %v1222
        %v1440 = vtanh.pop %v1227
        %v1441 = vtanh.pop %v1232
        %v1442 = vtanh.pop %v1237
        %v1443 = vtanh.pop %v1242
        %v1444 = vtanh.pop %v1247
        %v1445 = vtanh.pop %v1252
        %v1446 = vtanh.pop %v1257
        %v1447 = vtanh.pop %v1262
        %v1448 = vtanh.pop %v1267
        %v1449 = vtanh.pop %v1272
        %v1450 = vtanh.pop %v1277
        %v1451 = vtanh.pop %v1282
        %v1452 = vtanh.pop %v1287
        %v1453 = vtanh.pop %v1292
        %v1454 = vtanh.pop %v1297
        %v1455 = vtanh.pop %v1302
        %v1456 = vtanh.pop %v1307
        %v1457 = vtanh.pop %v1312
        %v1458 = vtanh.pop %v1317
        %v1459 = vtanh.pop %v1322
        %v1460 = vtanh.pop %v1327
        %v1461 = vtanh.pop %v1332
        %v1462 = vtanh.pop %v1337
        %v1463 = vtanh.pop %v1342
        %v1464 = vtanh.pop %v1347
        %v1465 = vtanh.pop %v1352
        %v1466 = vtanh.pop %v1357
        %v1467 = vtanh.pop %v1362
        %v1468 = vtanh.pop %v1367
        %v1469 = vtanh.pop %v1372
        %v1470 = vtanh.pop %v1377
        %v1471 = vtanh.pop %v1382
        %v1472 = vtanh.pop %v1387
        %v1473 = vtanh.pop %v1392
        %v1474 = vtanh.pop %v1397
        %v1475 = vtanh.pop %v1402
        %v1476 = vtanh.pop %v1407
        %v1477 = vtanh.pop %v1412
        %s1478 = scalar_lea.vmem %s3, 128
        %v1479 = vld [vmem:[%s1478] sm:$0xff]
        %v1480 = vld [vmem:[%s1478 + $0x8] sm:$0xff]
        %v1481 = vld [vmem:[%s1478 + $0x10] sm:$0xff]
        %v1482 = vld [vmem:[%s1478 + $0x18] sm:$0xff]
        %v1483 = vld [vmem:[%s1478 + $0x20] sm:$0xff]
        %v1484 = vld [vmem:[%s1478 + $0x28] sm:$0xff]
        %v1485 = vld [vmem:[%s1478 + $0x30] sm:$0xff]
        %v1486 = vld [vmem:[%s1478 + $0x38] sm:$0xff]
        %v1487 = vld [vmem:[%s1478 + $0x40] sm:$0xff]
        %v1488 = vld [vmem:[%s1478 + $0x48] sm:$0xff]
        %v1489 = vld [vmem:[%s1478 + $0x50] sm:$0xff]
        %v1490 = vld [vmem:[%s1478 + $0x58] sm:$0xff]
        %v1491 = vld [vmem:[%s1478 + $0x60] sm:$0xff]
        %v1492 = vld [vmem:[%s1478 + $0x68] sm:$0xff]
        %v1493 = vld [vmem:[%s1478 + $0x70] sm:$0xff]
        %v1494 = vld [vmem:[%s1478 + $0x78] sm:$0xff]
        %s1495 = scalar_lea.vmem %s4, 1
        %v1496 = vld [vmem:[%s1495] sm:$0x1]
        %v1498 = vlaneseq
        %v1499 = vshrl.u32 %v1498, 7
        %v1500 = vsub.s32 0, %v1499
        %v1501 = vrot.slane %v1496, %v1500
        %1503 = vmatprep.subr.mxu0 0.0
        %1504 = vmatpush1.msra.mxu0 %v1479
        %1505 = vmatprep.subr.mxu0 0.0
        %1506 = vmatpush1.msra.mxu0 %v1480
        %1507 = vmatprep.subr.mxu0 0.0
        %1508 = vmatpush1.msra.mxu0 %v1481
        %1509 = vmatprep.subr.mxu0 0.0
        %1510 = vmatpush1.msra.mxu0 %v1482
        %1511 = vmatprep.subr.mxu0 0.0
        %1512 = vmatpush1.msra.mxu0 %v1483
        %1513 = vmatprep.subr.mxu0 0.0
        %1514 = vmatpush1.msra.mxu0 %v1484
        %1515 = vmatprep.subr.mxu0 0.0
        %1516 = vmatpush1.msra.mxu0 %v1485
        %1517 = vmatprep.subr.mxu0 0.0
        %1518 = vmatpush1.msra.mxu0 %v1486
        %1519 = vmatprep.subr.mxu0 0.0
        %1520 = vmatpush1.msra.mxu0 %v1487
        %1521 = vmatprep.subr.mxu0 0.0
        %1522 = vmatpush1.msra.mxu0 %v1488
        %1523 = vmatprep.subr.mxu0 0.0
        %1524 = vmatpush1.msra.mxu0 %v1489
        %1525 = vmatprep.subr.mxu0 0.0
        %1526 = vmatpush1.msra.mxu0 %v1490
        %1527 = vmatprep.subr.mxu0 0.0
        %1528 = vmatpush1.msra.mxu0 %v1491
        %1529 = vmatprep.subr.mxu0 0.0
        %1530 = vmatpush1.msra.mxu0 %v1492
        %1531 = vmatprep.subr.mxu0 0.0
        %1532 = vmatpush1.msra.mxu0 %v1493
        %1533 = vmatprep.subr.mxu0 0.0
        %1534 = vmatpush1.msra.mxu0 %v1494
        %1535 = vmatprep.subr.mxu0 0.0
        %1536 = vmatpush1.msra.mxu0 0.0
        %1537 = vmatprep.subr.mxu0 0.0
        %1538 = vmatpush1.msra.mxu0 0.0
        %1539 = vmatprep.subr.mxu0 0.0
        %1540 = vmatpush1.msra.mxu0 0.0
        %1541 = vmatprep.subr.mxu0 0.0
        %1542 = vmatpush1.msra.mxu0 0.0
        %1543 = vmatprep.subr.mxu0 0.0
        %1544 = vmatpush1.msra.mxu0 0.0
        %1545 = vmatprep.subr.mxu0 0.0
        %1546 = vmatpush1.msra.mxu0 0.0
        %1547 = vmatprep.subr.mxu0 0.0
        %1548 = vmatpush1.msra.mxu0 0.0
        %1549 = vmatprep.subr.mxu0 0.0
        %1550 = vmatpush1.msra.mxu0 0.0
        %1551 = vmatprep.subr.mxu0 0.0
        %1552 = vmatpush1.msra.mxu0 0.0
        %1553 = vmatprep.subr.mxu0 0.0
        %1554 = vmatpush1.msra.mxu0 0.0
        %1555 = vmatprep.subr.mxu0 0.0
        %1556 = vmatpush1.msra.mxu0 0.0
        %1557 = vmatprep.subr.mxu0 0.0
        %1558 = vmatpush1.msra.mxu0 0.0
        %1559 = vmatprep.subr.mxu0 0.0
        %1560 = vmatpush1.msra.mxu0 0.0
        %1561 = vmatprep.subr.mxu0 0.0
        %1562 = vmatpush1.msra.mxu0 0.0
        %1563 = vmatprep.subr.mxu0 0.0
        %1564 = vmatpush1.msra.mxu0 0.0
        %1565 = vmatprep.subr.mxu0 0.0
        %1566 = vmatpush1.msra.mxu0 0.0
        %1567 = vmatprep.mubr.f32.mxu0 0.0
        %1568 = vmatmul.mubr.f32.gmra.mrb[0].mxu0 %v1415
        %v1569 = vpop.f32.mrb[0].mxu0
        %v1570 = vadd.f32 %v1501, %v1569
        %v1571 = vpop.f32.mrb[0].mxu0
        %1572 = vmatprep.mubr.f32.mxu0 0.0
        %1573 = vmatmul.mubr.f32.gmra.mrb[0].mxu0 %v1416
        %v1574 = vpop.f32.mrb[0].mxu0
        %v1575 = vadd.f32 %v1501, %v1574
        %v1576 = vpop.f32.mrb[0].mxu0
        %1577 = vmatprep.mubr.f32.mxu0 0.0
        %1578 = vmatmul.mubr.f32.gmra.mrb[0].mxu0 %v1417
        %v1579 = vpop.f32.mrb[0].mxu0
        %v1580 = vadd.f32 %v1501, %v1579
        %v1581 = vpop.f32.mrb[0].mxu0
        %1582 = vmatprep.mubr.f32.mxu0 0.0
        %1583 = vmatmul.mubr.f32.gmra.mrb[0].mxu0 %v1418
        %v1584 = vpop.f32.mrb[0].mxu0
        %v1585 = vadd.f32 %v1501, %v1584
        %v1586 = vpop.f32.mrb[0].mxu0
        %1587 = vmatprep.mubr.f32.mxu0 0.0
        %1588 = vmatmul.mubr.f32.gmra.mrb[0].mxu0 %v1419
        %v1589 = vpop.f32.mrb[0].mxu0
        %v1590 = vadd.f32 %v1501, %v1589
        %v1591 = vpop.f32.mrb[0].mxu0
        %1592 = vmatprep.mubr.f32.mxu0 0.0
        %1593 = vmatmul.mubr.f32.gmra.mrb[0].mxu0 %v1420
        %v1594 = vpop.f32.mrb[0].mxu0
        %v1595 = vadd.f32 %v1501, %v1594
        %v1596 = vpop.f32.mrb[0].mxu0
        %1597 = vmatprep.mubr.f32.mxu0 0.0
        %1598 = vmatmul.mubr.f32.gmra.mrb[0].mxu0 %v1421
        %v1599 = vpop.f32.mrb[0].mxu0
        %v1600 = vadd.f32 %v1501, %v1599
        %v1601 = vpop.f32.mrb[0].mxu0
        %1602 = vmatprep.mubr.f32.mxu0 0.0
        %1603 = vmatmul.mubr.f32.gmra.mrb[0].mxu0 %v1422
        %v1604 = vpop.f32.mrb[0].mxu0
        %v1605 = vadd.f32 %v1501, %v1604
        %v1606 = vpop.f32.mrb[0].mxu0
        %1607 = vmatprep.mubr.f32.mxu0 0.0
        %1608 = vmatmul.mubr.f32.gmra.mrb[0].mxu0 %v1423
        %v1609 = vpop.f32.mrb[0].mxu0
        %v1610 = vadd.f32 %v1501, %v1609
        %v1611 = vpop.f32.mrb[0].mxu0
        %1612 = vmatprep.mubr.f32.mxu0 0.0
        %1613 = vmatmul.mubr.f32.gmra.mrb[0].mxu0 %v1424
        %v1614 = vpop.f32.mrb[0].mxu0
        %v1615 = vadd.f32 %v1501, %v1614
        %v1616 = vpop.f32.mrb[0].mxu0
        %1617 = vmatprep.mubr.f32.mxu0 0.0
        %1618 = vmatmul.mubr.f32.gmra.mrb[0].mxu0 %v1425
        %v1619 = vpop.f32.mrb[0].mxu0
        %v1620 = vadd.f32 %v1501, %v1619
        %v1621 = vpop.f32.mrb[0].mxu0
        %1622 = vmatprep.mubr.f32.mxu0 0.0
        %1623 = vmatmul.mubr.f32.gmra.mrb[0].mxu0 %v1426
        %v1624 = vpop.f32.mrb[0].mxu0
        %v1625 = vadd.f32 %v1501, %v1624
        %v1626 = vpop.f32.mrb[0].mxu0
        %1627 = vmatprep.mubr.f32.mxu0 0.0
        %1628 = vmatmul.mubr.f32.gmra.mrb[0].mxu0 %v1427
        %v1629 = vpop.f32.mrb[0].mxu0
        %v1630 = vadd.f32 %v1501, %v1629
        %v1631 = vpop.f32.mrb[0].mxu0
        %1632 = vmatprep.mubr.f32.mxu0 0.0
        %1633 = vmatmul.mubr.f32.gmra.mrb[0].mxu0 %v1428
        %v1634 = vpop.f32.mrb[0].mxu0
        %v1635 = vadd.f32 %v1501, %v1634
        %v1636 = vpop.f32.mrb[0].mxu0
        %1637 = vmatprep.mubr.f32.mxu0 0.0
        %1638 = vmatmul.mubr.f32.gmra.mrb[0].mxu0 %v1429
        %v1639 = vpop.f32.mrb[0].mxu0
        %v1640 = vadd.f32 %v1501, %v1639
        %v1641 = vpop.f32.mrb[0].mxu0
        %1642 = vmatprep.mubr.f32.mxu0 0.0
        %1643 = vmatmul.mubr.f32.gmra.mrb[0].mxu0 %v1430
        %v1644 = vpop.f32.mrb[0].mxu0
        %v1645 = vadd.f32 %v1501, %v1644
        %v1646 = vpop.f32.mrb[0].mxu0
        %1647 = vmatprep.mubr.f32.mxu0 0.0
        %1648 = vmatmul.mubr.f32.gmra.mrb[0].mxu0 %v1431
        %v1649 = vpop.f32.mrb[0].mxu0
        %v1650 = vadd.f32 %v1501, %v1649
        %v1651 = vpop.f32.mrb[0].mxu0
        %1652 = vmatprep.mubr.f32.mxu0 0.0
        %1653 = vmatmul.mubr.f32.gmra.mrb[0].mxu0 %v1432
        %v1654 = vpop.f32.mrb[0].mxu0
        %v1655 = vadd.f32 %v1501, %v1654
        %v1656 = vpop.f32.mrb[0].mxu0
        %1657 = vmatprep.mubr.f32.mxu0 0.0
        %1658 = vmatmul.mubr.f32.gmra.mrb[0].mxu0 %v1433
        %v1659 = vpop.f32.mrb[0].mxu0
        %v1660 = vadd.f32 %v1501, %v1659
        %v1661 = vpop.f32.mrb[0].mxu0
        %1662 = vmatprep.mubr.f32.mxu0 0.0
        %1663 = vmatmul.mubr.f32.gmra.mrb[0].mxu0 %v1434
        %v1664 = vpop.f32.mrb[0].mxu0
        %v1665 = vadd.f32 %v1501, %v1664
        %v1666 = vpop.f32.mrb[0].mxu0
        %1667 = vmatprep.mubr.f32.mxu0 0.0
        %1668 = vmatmul.mubr.f32.gmra.mrb[0].mxu0 %v1435
        %v1669 = vpop.f32.mrb[0].mxu0
        %v1670 = vadd.f32 %v1501, %v1669
        %v1671 = vpop.f32.mrb[0].mxu0
        %1672 = vmatprep.mubr.f32.mxu0 0.0
        %1673 = vmatmul.mubr.f32.gmra.mrb[0].mxu0 %v1436
        %v1674 = vpop.f32.mrb[0].mxu0
        %v1675 = vadd.f32 %v1501, %v1674
        %v1676 = vpop.f32.mrb[0].mxu0
        %1677 = vmatprep.mubr.f32.mxu0 0.0
        %1678 = vmatmul.mubr.f32.gmra.mrb[0].mxu0 %v1437
        %v1679 = vpop.f32.mrb[0].mxu0
        %v1680 = vadd.f32 %v1501, %v1679
        %v1681 = vpop.f32.mrb[0].mxu0
        %1682 = vmatprep.mubr.f32.mxu0 0.0
        %1683 = vmatmul.mubr.f32.gmra.mrb[0].mxu0 %v1438
        %v1684 = vpop.f32.mrb[0].mxu0
        %v1685 = vadd.f32 %v1501, %v1684
        %v1686 = vpop.f32.mrb[0].mxu0
        %1687 = vmatprep.mubr.f32.mxu0 0.0
        %1688 = vmatmul.mubr.f32.gmra.mrb[0].mxu0 %v1439
        %v1689 = vpop.f32.mrb[0].mxu0
        %v1690 = vadd.f32 %v1501, %v1689
        %v1691 = vpop.f32.mrb[0].mxu0
        %1692 = vmatprep.mubr.f32.mxu0 0.0
        %1693 = vmatmul.mubr.f32.gmra.mrb[0].mxu0 %v1440
        %v1694 = vpop.f32.mrb[0].mxu0
        %v1695 = vadd.f32 %v1501, %v1694
        %v1696 = vpop.f32.mrb[0].mxu0
        %1697 = vmatprep.mubr.f32.mxu0 0.0
        %1698 = vmatmul.mubr.f32.gmra.mrb[0].mxu0 %v1441
        %v1699 = vpop.f32.mrb[0].mxu0
        %v1700 = vadd.f32 %v1501, %v1699
        %v1701 = vpop.f32.mrb[0].mxu0
        %1702 = vmatprep.mubr.f32.mxu0 0.0
        %1703 = vmatmul.mubr.f32.gmra.mrb[0].mxu0 %v1442
        %v1704 = vpop.f32.mrb[0].mxu0
        %v1705 = vadd.f32 %v1501, %v1704
        %v1706 = vpop.f32.mrb[0].mxu0
        %1707 = vmatprep.mubr.f32.mxu0 0.0
        %1708 = vmatmul.mubr.f32.gmra.mrb[0].mxu0 %v1443
        %v1709 = vpop.f32.mrb[0].mxu0
        %v1710 = vadd.f32 %v1501, %v1709
        %v1711 = vpop.f32.mrb[0].mxu0
        %1712 = vmatprep.mubr.f32.mxu0 0.0
        %1713 = vmatmul.mubr.f32.gmra.mrb[0].mxu0 %v1444
        %v1714 = vpop.f32.mrb[0].mxu0
        %v1715 = vadd.f32 %v1501, %v1714
        %v1716 = vpop.f32.mrb[0].mxu0
        %1717 = vmatprep.mubr.f32.mxu0 0.0
        %1718 = vmatmul.mubr.f32.gmra.mrb[0].mxu0 %v1445
        %v1719 = vpop.f32.mrb[0].mxu0
        %v1720 = vadd.f32 %v1501, %v1719
        %v1721 = vpop.f32.mrb[0].mxu0
        %1722 = vmatprep.mubr.f32.mxu0 0.0
        %1723 = vmatmul.mubr.f32.gmra.mrb[0].mxu0 %v1446
        %v1724 = vpop.f32.mrb[0].mxu0
        %v1725 = vadd.f32 %v1501, %v1724
        %v1726 = vpop.f32.mrb[0].mxu0
        %1727 = vmatprep.mubr.f32.mxu0 0.0
        %1728 = vmatmul.mubr.f32.gmra.mrb[0].mxu0 %v1447
        %v1729 = vpop.f32.mrb[0].mxu0
        %v1730 = vadd.f32 %v1501, %v1729
        %v1731 = vpop.f32.mrb[0].mxu0
        %1732 = vmatprep.mubr.f32.mxu0 0.0
        %1733 = vmatmul.mubr.f32.gmra.mrb[0].mxu0 %v1448
        %v1734 = vpop.f32.mrb[0].mxu0
        %v1735 = vadd.f32 %v1501, %v1734
        %v1736 = vpop.f32.mrb[0].mxu0
        %1737 = vmatprep.mubr.f32.mxu0 0.0
        %1738 = vmatmul.mubr.f32.gmra.mrb[0].mxu0 %v1449
        %v1739 = vpop.f32.mrb[0].mxu0
        %v1740 = vadd.f32 %v1501, %v1739
        %v1741 = vpop.f32.mrb[0].mxu0
        %1742 = vmatprep.mubr.f32.mxu0 0.0
        %1743 = vmatmul.mubr.f32.gmra.mrb[0].mxu0 %v1450
        %v1744 = vpop.f32.mrb[0].mxu0
        %v1745 = vadd.f32 %v1501, %v1744
        %v1746 = vpop.f32.mrb[0].mxu0
        %1747 = vmatprep.mubr.f32.mxu0 0.0
        %1748 = vmatmul.mubr.f32.gmra.mrb[0].mxu0 %v1451
        %v1749 = vpop.f32.mrb[0].mxu0
        %v1750 = vadd.f32 %v1501, %v1749
        %v1751 = vpop.f32.mrb[0].mxu0
        %1752 = vmatprep.mubr.f32.mxu0 0.0
        %1753 = vmatmul.mubr.f32.gmra.mrb[0].mxu0 %v1452
        %v1754 = vpop.f32.mrb[0].mxu0
        %v1755 = vadd.f32 %v1501, %v1754
        %v1756 = vpop.f32.mrb[0].mxu0
        %1757 = vmatprep.mubr.f32.mxu0 0.0
        %1758 = vmatmul.mubr.f32.gmra.mrb[0].mxu0 %v1453
        %v1759 = vpop.f32.mrb[0].mxu0
        %v1760 = vadd.f32 %v1501, %v1759
        %v1761 = vpop.f32.mrb[0].mxu0
        %1762 = vmatprep.mubr.f32.mxu0 0.0
        %1763 = vmatmul.mubr.f32.gmra.mrb[0].mxu0 %v1454
        %v1764 = vpop.f32.mrb[0].mxu0
        %v1765 = vadd.f32 %v1501, %v1764
        %v1766 = vpop.f32.mrb[0].mxu0
        %1767 = vmatprep.mubr.f32.mxu0 0.0
        %1768 = vmatmul.mubr.f32.gmra.mrb[0].mxu0 %v1455
        %v1769 = vpop.f32.mrb[0].mxu0
        %v1770 = vadd.f32 %v1501, %v1769
        %v1771 = vpop.f32.mrb[0].mxu0
        %1772 = vmatprep.mubr.f32.mxu0 0.0
        %1773 = vmatmul.mubr.f32.gmra.mrb[0].mxu0 %v1456
        %v1774 = vpop.f32.mrb[0].mxu0
        %v1775 = vadd.f32 %v1501, %v1774
        %v1776 = vpop.f32.mrb[0].mxu0
        %1777 = vmatprep.mubr.f32.mxu0 0.0
        %1778 = vmatmul.mubr.f32.gmra.mrb[0].mxu0 %v1457
        %v1779 = vpop.f32.mrb[0].mxu0
        %v1780 = vadd.f32 %v1501, %v1779
        %v1781 = vpop.f32.mrb[0].mxu0
        %1782 = vmatprep.mubr.f32.mxu0 0.0
        %1783 = vmatmul.mubr.f32.gmra.mrb[0].mxu0 %v1458
        %v1784 = vpop.f32.mrb[0].mxu0
        %v1785 = vadd.f32 %v1501, %v1784
        %v1786 = vpop.f32.mrb[0].mxu0
        %1787 = vmatprep.mubr.f32.mxu0 0.0
        %1788 = vmatmul.mubr.f32.gmra.mrb[0].mxu0 %v1459
        %v1789 = vpop.f32.mrb[0].mxu0
        %v1790 = vadd.f32 %v1501, %v1789
        %v1791 = vpop.f32.mrb[0].mxu0
        %1792 = vmatprep.mubr.f32.mxu0 0.0
        %1793 = vmatmul.mubr.f32.gmra.mrb[0].mxu0 %v1460
        %v1794 = vpop.f32.mrb[0].mxu0
        %v1795 = vadd.f32 %v1501, %v1794
        %v1796 = vpop.f32.mrb[0].mxu0
        %1797 = vmatprep.mubr.f32.mxu0 0.0
        %1798 = vmatmul.mubr.f32.gmra.mrb[0].mxu0 %v1461
        %v1799 = vpop.f32.mrb[0].mxu0
        %v1800 = vadd.f32 %v1501, %v1799
        %v1801 = vpop.f32.mrb[0].mxu0
        %1802 = vmatprep.mubr.f32.mxu0 0.0
        %1803 = vmatmul.mubr.f32.gmra.mrb[0].mxu0 %v1462
        %v1804 = vpop.f32.mrb[0].mxu0
        %v1805 = vadd.f32 %v1501, %v1804
        %v1806 = vpop.f32.mrb[0].mxu0
        %1807 = vmatprep.mubr.f32.mxu0 0.0
        %1808 = vmatmul.mubr.f32.gmra.mrb[0].mxu0 %v1463
        %v1809 = vpop.f32.mrb[0].mxu0
        %v1810 = vadd.f32 %v1501, %v1809
        %v1811 = vpop.f32.mrb[0].mxu0
        %1812 = vmatprep.mubr.f32.mxu0 0.0
        %1813 = vmatmul.mubr.f32.gmra.mrb[0].mxu0 %v1464
        %v1814 = vpop.f32.mrb[0].mxu0
        %v1815 = vadd.f32 %v1501, %v1814
        %v1816 = vpop.f32.mrb[0].mxu0
        %1817 = vmatprep.mubr.f32.mxu0 0.0
        %1818 = vmatmul.mubr.f32.gmra.mrb[0].mxu0 %v1465
        %v1819 = vpop.f32.mrb[0].mxu0
        %v1820 = vadd.f32 %v1501, %v1819
        %v1821 = vpop.f32.mrb[0].mxu0
        %1822 = vmatprep.mubr.f32.mxu0 0.0
        %1823 = vmatmul.mubr.f32.gmra.mrb[0].mxu0 %v1466
        %v1824 = vpop.f32.mrb[0].mxu0
        %v1825 = vadd.f32 %v1501, %v1824
        %v1826 = vpop.f32.mrb[0].mxu0
        %1827 = vmatprep.mubr.f32.mxu0 0.0
        %1828 = vmatmul.mubr.f32.gmra.mrb[0].mxu0 %v1467
        %v1829 = vpop.f32.mrb[0].mxu0
        %v1830 = vadd.f32 %v1501, %v1829
        %v1831 = vpop.f32.mrb[0].mxu0
        %1832 = vmatprep.mubr.f32.mxu0 0.0
        %1833 = vmatmul.mubr.f32.gmra.mrb[0].mxu0 %v1468
        %v1834 = vpop.f32.mrb[0].mxu0
        %v1835 = vadd.f32 %v1501, %v1834
        %v1836 = vpop.f32.mrb[0].mxu0
        %1837 = vmatprep.mubr.f32.mxu0 0.0
        %1838 = vmatmul.mubr.f32.gmra.mrb[0].mxu0 %v1469
        %v1839 = vpop.f32.mrb[0].mxu0
        %v1840 = vadd.f32 %v1501, %v1839
        %v1841 = vpop.f32.mrb[0].mxu0
        %1842 = vmatprep.mubr.f32.mxu0 0.0
        %1843 = vmatmul.mubr.f32.gmra.mrb[0].mxu0 %v1470
        %v1844 = vpop.f32.mrb[0].mxu0
        %v1845 = vadd.f32 %v1501, %v1844
        %v1846 = vpop.f32.mrb[0].mxu0
        %1847 = vmatprep.mubr.f32.mxu0 0.0
        %1848 = vmatmul.mubr.f32.gmra.mrb[0].mxu0 %v1471
        %v1849 = vpop.f32.mrb[0].mxu0
        %v1850 = vadd.f32 %v1501, %v1849
        %v1851 = vpop.f32.mrb[0].mxu0
        %1852 = vmatprep.mubr.f32.mxu0 0.0
        %1853 = vmatmul.mubr.f32.gmra.mrb[0].mxu0 %v1472
        %v1854 = vpop.f32.mrb[0].mxu0
        %v1855 = vadd.f32 %v1501, %v1854
        %v1856 = vpop.f32.mrb[0].mxu0
        %1857 = vmatprep.mubr.f32.mxu0 0.0
        %1858 = vmatmul.mubr.f32.gmra.mrb[0].mxu0 %v1473
        %v1859 = vpop.f32.mrb[0].mxu0
        %v1860 = vadd.f32 %v1501, %v1859
        %v1861 = vpop.f32.mrb[0].mxu0
        %1862 = vmatprep.mubr.f32.mxu0 0.0
        %1863 = vmatmul.mubr.f32.gmra.mrb[0].mxu0 %v1474
        %v1864 = vpop.f32.mrb[0].mxu0
        %v1865 = vadd.f32 %v1501, %v1864
        %v1866 = vpop.f32.mrb[0].mxu0
        %1867 = vmatprep.mubr.f32.mxu0 0.0
        %1868 = vmatmul.mubr.f32.gmra.mrb[0].mxu0 %v1475
        %v1869 = vpop.f32.mrb[0].mxu0
        %v1870 = vadd.f32 %v1501, %v1869
        %v1871 = vpop.f32.mrb[0].mxu0
        %1872 = vmatprep.mubr.f32.mxu0 0.0
        %1873 = vmatmul.mubr.f32.gmra.mrb[0].mxu0 %v1476
        %v1874 = vpop.f32.mrb[0].mxu0
        %v1875 = vadd.f32 %v1501, %v1874
        %v1876 = vpop.f32.mrb[0].mxu0
        %1877 = vmatprep.mubr.f32.mxu0 0.0
        %1878 = vmatmul.mubr.f32.gmra.mrb[0].mxu0 %v1477
        %v1879 = vpop.f32.mrb[0].mxu0
        %v1880 = vadd.f32 %v1501, %v1879
        %v1881 = vpop.f32.mrb[0].mxu0
        %1882 = vdwg.mxu0
        %v1883 = vtanh.pop %v1570
        %v1884 = vtanh.pop %v1575
        %v1885 = vtanh.pop %v1580
        %v1886 = vtanh.pop %v1585
        %v1887 = vtanh.pop %v1590
        %v1888 = vtanh.pop %v1595
        %v1889 = vtanh.pop %v1600
        %v1890 = vtanh.pop %v1605
        %v1891 = vtanh.pop %v1610
        %v1892 = vtanh.pop %v1615
        %v1893 = vtanh.pop %v1620
        %v1894 = vtanh.pop %v1625
        %v1895 = vtanh.pop %v1630
        %v1896 = vtanh.pop %v1635
        %v1897 = vtanh.pop %v1640
        %v1898 = vtanh.pop %v1645
        %v1899 = vtanh.pop %v1650
        %v1900 = vtanh.pop %v1655
        %v1901 = vtanh.pop %v1660
        %v1902 = vtanh.pop %v1665
        %v1903 = vtanh.pop %v1670
        %v1904 = vtanh.pop %v1675
        %v1905 = vtanh.pop %v1680
        %v1906 = vtanh.pop %v1685
        %v1907 = vtanh.pop %v1690
        %v1908 = vtanh.pop %v1695
        %v1909 = vtanh.pop %v1700
        %v1910 = vtanh.pop %v1705
        %v1911 = vtanh.pop %v1710
        %v1912 = vtanh.pop %v1715
        %v1913 = vtanh.pop %v1720
        %v1914 = vtanh.pop %v1725
        %v1915 = vtanh.pop %v1730
        %v1916 = vtanh.pop %v1735
        %v1917 = vtanh.pop %v1740
        %v1918 = vtanh.pop %v1745
        %v1919 = vtanh.pop %v1750
        %v1920 = vtanh.pop %v1755
        %v1921 = vtanh.pop %v1760
        %v1922 = vtanh.pop %v1765
        %v1923 = vtanh.pop %v1770
        %v1924 = vtanh.pop %v1775
        %v1925 = vtanh.pop %v1780
        %v1926 = vtanh.pop %v1785
        %v1927 = vtanh.pop %v1790
        %v1928 = vtanh.pop %v1795
        %v1929 = vtanh.pop %v1800
        %v1930 = vtanh.pop %v1805
        %v1931 = vtanh.pop %v1810
        %v1932 = vtanh.pop %v1815
        %v1933 = vtanh.pop %v1820
        %v1934 = vtanh.pop %v1825
        %v1935 = vtanh.pop %v1830
        %v1936 = vtanh.pop %v1835
        %v1937 = vtanh.pop %v1840
        %v1938 = vtanh.pop %v1845
        %v1939 = vtanh.pop %v1850
        %v1940 = vtanh.pop %v1855
        %v1941 = vtanh.pop %v1860
        %v1942 = vtanh.pop %v1865
        %v1943 = vtanh.pop %v1870
        %v1944 = vtanh.pop %v1875
        %v1945 = vtanh.pop %v1880
        %v1946 = vld [vmem:[%s5] sm:$0xff]
        %v1947 = vld [vmem:[%s5 + $0x8] sm:$0xff]
        %v1948 = vld [vmem:[%s5 + $0x10] sm:$0xff]
        %v1949 = vld [vmem:[%s5 + $0x18] sm:$0xff]
        %v1950 = vld [vmem:[%s5 + $0x20] sm:$0xff]
        %v1951 = vld [vmem:[%s5 + $0x28] sm:$0xff]
        %v1952 = vld [vmem:[%s5 + $0x30] sm:$0xff]
        %v1953 = vld [vmem:[%s5 + $0x38] sm:$0xff]
        %v1954 = vld [vmem:[%s5 + $0x40] sm:$0xff]
        %v1955 = vld [vmem:[%s5 + $0x48] sm:$0xff]
        %v1956 = vld [vmem:[%s5 + $0x50] sm:$0xff]
        %v1957 = vld [vmem:[%s5 + $0x58] sm:$0xff]
        %v1958 = vld [vmem:[%s5 + $0x60] sm:$0xff]
        %v1959 = vld [vmem:[%s5 + $0x68] sm:$0xff]
        %v1960 = vld [vmem:[%s5 + $0x70] sm:$0xff]
        %v1961 = vld [vmem:[%s5 + $0x78] sm:$0xff]
        %v1962 = vld [vmem:[%s6] sm:$0x1]
        %v1964 = vlaneseq
        %v1965 = vshrl.u32 %v1964, 7
        %v1966 = vsub.s32 0, %v1965
        %v1967 = vrot.slane %v1962, %v1966
        %1969 = vmatprep.subr.mxu0 0.0
        %1970 = vmatpush1.msra.mxu0 %v1946
        %1971 = vmatprep.subr.mxu0 0.0
        %1972 = vmatpush1.msra.mxu0 %v1947
        %1973 = vmatprep.subr.mxu0 0.0
        %1974 = vmatpush1.msra.mxu0 %v1948
        %1975 = vmatprep.subr.mxu0 0.0
        %1976 = vmatpush1.msra.mxu0 %v1949
        %1977 = vmatprep.subr.mxu0 0.0
        %1978 = vmatpush1.msra.mxu0 %v1950
        %1979 = vmatprep.subr.mxu0 0.0
        %1980 = vmatpush1.msra.mxu0 %v1951
        %1981 = vmatprep.subr.mxu0 0.0
        %1982 = vmatpush1.msra.mxu0 %v1952
        %1983 = vmatprep.subr.mxu0 0.0
        %1984 = vmatpush1.msra.mxu0 %v1953
        %1985 = vmatprep.subr.mxu0 0.0
        %1986 = vmatpush1.msra.mxu0 %v1954
        %1987 = vmatprep.subr.mxu0 0.0
        %1988 = vmatpush1.msra.mxu0 %v1955
        %1989 = vmatprep.subr.mxu0 0.0
        %1990 = vmatpush1.msra.mxu0 %v1956
        %1991 = vmatprep.subr.mxu0 0.0
        %1992 = vmatpush1.msra.mxu0 %v1957
        %1993 = vmatprep.subr.mxu0 0.0
        %1994 = vmatpush1.msra.mxu0 %v1958
        %1995 = vmatprep.subr.mxu0 0.0
        %1996 = vmatpush1.msra.mxu0 %v1959
        %1997 = vmatprep.subr.mxu0 0.0
        %1998 = vmatpush1.msra.mxu0 %v1960
        %1999 = vmatprep.subr.mxu0 0.0
        %2000 = vmatpush1.msra.mxu0 %v1961
        %2001 = vmatprep.subr.mxu0 0.0
        %2002 = vmatpush1.msra.mxu0 0.0
        %2003 = vmatprep.subr.mxu0 0.0
        %2004 = vmatpush1.msra.mxu0 0.0
        %2005 = vmatprep.subr.mxu0 0.0
        %2006 = vmatpush1.msra.mxu0 0.0
        %2007 = vmatprep.subr.mxu0 0.0
        %2008 = vmatpush1.msra.mxu0 0.0
        %2009 = vmatprep.subr.mxu0 0.0
        %2010 = vmatpush1.msra.mxu0 0.0
        %2011 = vmatprep.subr.mxu0 0.0
        %2012 = vmatpush1.msra.mxu0 0.0
        %2013 = vmatprep.subr.mxu0 0.0
        %2014 = vmatpush1.msra.mxu0 0.0
        %2015 = vmatprep.subr.mxu0 0.0
        %2016 = vmatpush1.msra.mxu0 0.0
        %2017 = vmatprep.subr.mxu0 0.0
        %2018 = vmatpush1.msra.mxu0 0.0
        %2019 = vmatprep.subr.mxu0 0.0
        %2020 = vmatpush1.msra.mxu0 0.0
        %2021 = vmatprep.subr.mxu0 0.0
        %2022 = vmatpush1.msra.mxu0 0.0
        %2023 = vmatprep.subr.mxu0 0.0
        %2024 = vmatpush1.msra.mxu0 0.0
        %2025 = vmatprep.subr.mxu0 0.0
        %2026 = vmatpush1.msra.mxu0 0.0
        %2027 = vmatprep.subr.mxu0 0.0
        %2028 = vmatpush1.msra.mxu0 0.0
        %2029 = vmatprep.subr.mxu0 0.0
        %2030 = vmatpush1.msra.mxu0 0.0
        %2031 = vmatprep.subr.mxu0 0.0
        %2032 = vmatpush1.msra.mxu0 0.0
        %2033 = vmatprep.mubr.f32.mxu0 0.0
        %2034 = vmatmul.mubr.f32.gmra.mrb[0].mxu0 %v1883
        %v2035 = vpop.f32.mrb[0].mxu0
        %v2036 = vadd.f32 %v1967, %v2035
        %v2037 = vpop.f32.mrb[0].mxu0
        %2038 = vmatprep.mubr.f32.mxu0 0.0
        %2039 = vmatmul.mubr.f32.gmra.mrb[0].mxu0 %v1884
        %v2040 = vpop.f32.mrb[0].mxu0
        %v2041 = vadd.f32 %v1967, %v2040
        %v2042 = vpop.f32.mrb[0].mxu0
        %2043 = vmatprep.mubr.f32.mxu0 0.0
        %2044 = vmatmul.mubr.f32.gmra.mrb[0].mxu0 %v1885
        %v2045 = vpop.f32.mrb[0].mxu0
        %v2046 = vadd.f32 %v1967, %v2045
        %v2047 = vpop.f32.mrb[0].mxu0
        %2048 = vmatprep.mubr.f32.mxu0 0.0
        %2049 = vmatmul.mubr.f32.gmra.mrb[0].mxu0 %v1886
        %v2050 = vpop.f32.mrb[0].mxu0
        %v2051 = vadd.f32 %v1967, %v2050
        %v2052 = vpop.f32.mrb[0].mxu0
        %2053 = vmatprep.mubr.f32.mxu0 0.0
        %2054 = vmatmul.mubr.f32.gmra.mrb[0].mxu0 %v1887
        %v2055 = vpop.f32.mrb[0].mxu0
        %v2056 = vadd.f32 %v1967, %v2055
        %v2057 = vpop.f32.mrb[0].mxu0
        %2058 = vmatprep.mubr.f32.mxu0 0.0
        %2059 = vmatmul.mubr.f32.gmra.mrb[0].mxu0 %v1888
        %v2060 = vpop.f32.mrb[0].mxu0
        %v2061 = vadd.f32 %v1967, %v2060
        %v2062 = vpop.f32.mrb[0].mxu0
        %2063 = vmatprep.mubr.f32.mxu0 0.0
        %2064 = vmatmul.mubr.f32.gmra.mrb[0].mxu0 %v1889
        %v2065 = vpop.f32.mrb[0].mxu0
        %v2066 = vadd.f32 %v1967, %v2065
        %v2067 = vpop.f32.mrb[0].mxu0
        %2068 = vmatprep.mubr.f32.mxu0 0.0
        %2069 = vmatmul.mubr.f32.gmra.mrb[0].mxu0 %v1890
        %v2070 = vpop.f32.mrb[0].mxu0
        %v2071 = vadd.f32 %v1967, %v2070
        %v2072 = vpop.f32.mrb[0].mxu0
        %2073 = vmatprep.mubr.f32.mxu0 0.0
        %2074 = vmatmul.mubr.f32.gmra.mrb[0].mxu0 %v1891
        %v2075 = vpop.f32.mrb[0].mxu0
        %v2076 = vadd.f32 %v1967, %v2075
        %v2077 = vpop.f32.mrb[0].mxu0
        %2078 = vmatprep.mubr.f32.mxu0 0.0
        %2079 = vmatmul.mubr.f32.gmra.mrb[0].mxu0 %v1892
        %v2080 = vpop.f32.mrb[0].mxu0
        %v2081 = vadd.f32 %v1967, %v2080
        %v2082 = vpop.f32.mrb[0].mxu0
        %2083 = vmatprep.mubr.f32.mxu0 0.0
        %2084 = vmatmul.mubr.f32.gmra.mrb[0].mxu0 %v1893
        %v2085 = vpop.f32.mrb[0].mxu0
        %v2086 = vadd.f32 %v1967, %v2085
        %v2087 = vpop.f32.mrb[0].mxu0
        %2088 = vmatprep.mubr.f32.mxu0 0.0
        %2089 = vmatmul.mubr.f32.gmra.mrb[0].mxu0 %v1894
        %v2090 = vpop.f32.mrb[0].mxu0
        %v2091 = vadd.f32 %v1967, %v2090
        %v2092 = vpop.f32.mrb[0].mxu0
        %2093 = vmatprep.mubr.f32.mxu0 0.0
        %2094 = vmatmul.mubr.f32.gmra.mrb[0].mxu0 %v1895
        %v2095 = vpop.f32.mrb[0].mxu0
        %v2096 = vadd.f32 %v1967, %v2095
        %v2097 = vpop.f32.mrb[0].mxu0
        %2098 = vmatprep.mubr.f32.mxu0 0.0
        %2099 = vmatmul.mubr.f32.gmra.mrb[0].mxu0 %v1896
        %v2100 = vpop.f32.mrb[0].mxu0
        %v2101 = vadd.f32 %v1967, %v2100
        %v2102 = vpop.f32.mrb[0].mxu0
        %2103 = vmatprep.mubr.f32.mxu0 0.0
        %2104 = vmatmul.mubr.f32.gmra.mrb[0].mxu0 %v1897
        %v2105 = vpop.f32.mrb[0].mxu0
        %v2106 = vadd.f32 %v1967, %v2105
        %v2107 = vpop.f32.mrb[0].mxu0
        %2108 = vmatprep.mubr.f32.mxu0 0.0
        %2109 = vmatmul.mubr.f32.gmra.mrb[0].mxu0 %v1898
        %v2110 = vpop.f32.mrb[0].mxu0
        %v2111 = vadd.f32 %v1967, %v2110
        %v2112 = vpop.f32.mrb[0].mxu0
        %2113 = vmatprep.mubr.f32.mxu0 0.0
        %2114 = vmatmul.mubr.f32.gmra.mrb[0].mxu0 %v1899
        %v2115 = vpop.f32.mrb[0].mxu0
        %v2116 = vadd.f32 %v1967, %v2115
        %v2117 = vpop.f32.mrb[0].mxu0
        %2118 = vmatprep.mubr.f32.mxu0 0.0
        %2119 = vmatmul.mubr.f32.gmra.mrb[0].mxu0 %v1900
        %v2120 = vpop.f32.mrb[0].mxu0
        %v2121 = vadd.f32 %v1967, %v2120
        %v2122 = vpop.f32.mrb[0].mxu0
        %2123 = vmatprep.mubr.f32.mxu0 0.0
        %2124 = vmatmul.mubr.f32.gmra.mrb[0].mxu0 %v1901
        %v2125 = vpop.f32.mrb[0].mxu0
        %v2126 = vadd.f32 %v1967, %v2125
        %v2127 = vpop.f32.mrb[0].mxu0
        %2128 = vmatprep.mubr.f32.mxu0 0.0
        %2129 = vmatmul.mubr.f32.gmra.mrb[0].mxu0 %v1902
        %v2130 = vpop.f32.mrb[0].mxu0
        %v2131 = vadd.f32 %v1967, %v2130
        %v2132 = vpop.f32.mrb[0].mxu0
        %2133 = vmatprep.mubr.f32.mxu0 0.0
        %2134 = vmatmul.mubr.f32.gmra.mrb[0].mxu0 %v1903
        %v2135 = vpop.f32.mrb[0].mxu0
        %v2136 = vadd.f32 %v1967, %v2135
        %v2137 = vpop.f32.mrb[0].mxu0
        %2138 = vmatprep.mubr.f32.mxu0 0.0
        %2139 = vmatmul.mubr.f32.gmra.mrb[0].mxu0 %v1904
        %v2140 = vpop.f32.mrb[0].mxu0
        %v2141 = vadd.f32 %v1967, %v2140
        %v2142 = vpop.f32.mrb[0].mxu0
        %2143 = vmatprep.mubr.f32.mxu0 0.0
        %2144 = vmatmul.mubr.f32.gmra.mrb[0].mxu0 %v1905
        %v2145 = vpop.f32.mrb[0].mxu0
        %v2146 = vadd.f32 %v1967, %v2145
        %v2147 = vpop.f32.mrb[0].mxu0
        %2148 = vmatprep.mubr.f32.mxu0 0.0
        %2149 = vmatmul.mubr.f32.gmra.mrb[0].mxu0 %v1906
        %v2150 = vpop.f32.mrb[0].mxu0
        %v2151 = vadd.f32 %v1967, %v2150
        %v2152 = vpop.f32.mrb[0].mxu0
        %2153 = vmatprep.mubr.f32.mxu0 0.0
        %2154 = vmatmul.mubr.f32.gmra.mrb[0].mxu0 %v1907
        %v2155 = vpop.f32.mrb[0].mxu0
        %v2156 = vadd.f32 %v1967, %v2155
        %v2157 = vpop.f32.mrb[0].mxu0
        %2158 = vmatprep.mubr.f32.mxu0 0.0
        %2159 = vmatmul.mubr.f32.gmra.mrb[0].mxu0 %v1908
        %v2160 = vpop.f32.mrb[0].mxu0
        %v2161 = vadd.f32 %v1967, %v2160
        %v2162 = vpop.f32.mrb[0].mxu0
        %2163 = vmatprep.mubr.f32.mxu0 0.0
        %2164 = vmatmul.mubr.f32.gmra.mrb[0].mxu0 %v1909
        %v2165 = vpop.f32.mrb[0].mxu0
        %v2166 = vadd.f32 %v1967, %v2165
        %v2167 = vpop.f32.mrb[0].mxu0
        %2168 = vmatprep.mubr.f32.mxu0 0.0
        %2169 = vmatmul.mubr.f32.gmra.mrb[0].mxu0 %v1910
        %v2170 = vpop.f32.mrb[0].mxu0
        %v2171 = vadd.f32 %v1967, %v2170
        %v2172 = vpop.f32.mrb[0].mxu0
        %2173 = vmatprep.mubr.f32.mxu0 0.0
        %2174 = vmatmul.mubr.f32.gmra.mrb[0].mxu0 %v1911
        %v2175 = vpop.f32.mrb[0].mxu0
        %v2176 = vadd.f32 %v1967, %v2175
        %v2177 = vpop.f32.mrb[0].mxu0
        %2178 = vmatprep.mubr.f32.mxu0 0.0
        %2179 = vmatmul.mubr.f32.gmra.mrb[0].mxu0 %v1912
        %v2180 = vpop.f32.mrb[0].mxu0
        %v2181 = vadd.f32 %v1967, %v2180
        %v2182 = vpop.f32.mrb[0].mxu0
        %2183 = vmatprep.mubr.f32.mxu0 0.0
        %2184 = vmatmul.mubr.f32.gmra.mrb[0].mxu0 %v1913
        %v2185 = vpop.f32.mrb[0].mxu0
        %v2186 = vadd.f32 %v1967, %v2185
        %v2187 = vpop.f32.mrb[0].mxu0
        %2188 = vmatprep.mubr.f32.mxu0 0.0
        %2189 = vmatmul.mubr.f32.gmra.mrb[0].mxu0 %v1914
        %v2190 = vpop.f32.mrb[0].mxu0
        %v2191 = vadd.f32 %v1967, %v2190
        %v2192 = vpop.f32.mrb[0].mxu0
        %2193 = vmatprep.mubr.f32.mxu0 0.0
        %2194 = vmatmul.mubr.f32.gmra.mrb[0].mxu0 %v1915
        %v2195 = vpop.f32.mrb[0].mxu0
        %v2196 = vadd.f32 %v1967, %v2195
        %v2197 = vpop.f32.mrb[0].mxu0
        %2198 = vmatprep.mubr.f32.mxu0 0.0
        %2199 = vmatmul.mubr.f32.gmra.mrb[0].mxu0 %v1916
        %v2200 = vpop.f32.mrb[0].mxu0
        %v2201 = vadd.f32 %v1967, %v2200
        %v2202 = vpop.f32.mrb[0].mxu0
        %2203 = vmatprep.mubr.f32.mxu0 0.0
        %2204 = vmatmul.mubr.f32.gmra.mrb[0].mxu0 %v1917
        %v2205 = vpop.f32.mrb[0].mxu0
        %v2206 = vadd.f32 %v1967, %v2205
        %v2207 = vpop.f32.mrb[0].mxu0
        %2208 = vmatprep.mubr.f32.mxu0 0.0
        %2209 = vmatmul.mubr.f32.gmra.mrb[0].mxu0 %v1918
        %v2210 = vpop.f32.mrb[0].mxu0
        %v2211 = vadd.f32 %v1967, %v2210
        %v2212 = vpop.f32.mrb[0].mxu0
        %2213 = vmatprep.mubr.f32.mxu0 0.0
        %2214 = vmatmul.mubr.f32.gmra.mrb[0].mxu0 %v1919
        %v2215 = vpop.f32.mrb[0].mxu0
        %v2216 = vadd.f32 %v1967, %v2215
        %v2217 = vpop.f32.mrb[0].mxu0
        %2218 = vmatprep.mubr.f32.mxu0 0.0
        %2219 = vmatmul.mubr.f32.gmra.mrb[0].mxu0 %v1920
        %v2220 = vpop.f32.mrb[0].mxu0
        %v2221 = vadd.f32 %v1967, %v2220
        %v2222 = vpop.f32.mrb[0].mxu0
        %2223 = vmatprep.mubr.f32.mxu0 0.0
        %2224 = vmatmul.mubr.f32.gmra.mrb[0].mxu0 %v1921
        %v2225 = vpop.f32.mrb[0].mxu0
        %v2226 = vadd.f32 %v1967, %v2225
        %v2227 = vpop.f32.mrb[0].mxu0
        %2228 = vmatprep.mubr.f32.mxu0 0.0
        %2229 = vmatmul.mubr.f32.gmra.mrb[0].mxu0 %v1922
        %v2230 = vpop.f32.mrb[0].mxu0
        %v2231 = vadd.f32 %v1967, %v2230
        %v2232 = vpop.f32.mrb[0].mxu0
        %2233 = vmatprep.mubr.f32.mxu0 0.0
        %2234 = vmatmul.mubr.f32.gmra.mrb[0].mxu0 %v1923
        %v2235 = vpop.f32.mrb[0].mxu0
        %v2236 = vadd.f32 %v1967, %v2235
        %v2237 = vpop.f32.mrb[0].mxu0
        %2238 = vmatprep.mubr.f32.mxu0 0.0
        %2239 = vmatmul.mubr.f32.gmra.mrb[0].mxu0 %v1924
        %v2240 = vpop.f32.mrb[0].mxu0
        %v2241 = vadd.f32 %v1967, %v2240
        %v2242 = vpop.f32.mrb[0].mxu0
        %2243 = vmatprep.mubr.f32.mxu0 0.0
        %2244 = vmatmul.mubr.f32.gmra.mrb[0].mxu0 %v1925
        %v2245 = vpop.f32.mrb[0].mxu0
        %v2246 = vadd.f32 %v1967, %v2245
        %v2247 = vpop.f32.mrb[0].mxu0
        %2248 = vmatprep.mubr.f32.mxu0 0.0
        %2249 = vmatmul.mubr.f32.gmra.mrb[0].mxu0 %v1926
        %v2250 = vpop.f32.mrb[0].mxu0
        %v2251 = vadd.f32 %v1967, %v2250
        %v2252 = vpop.f32.mrb[0].mxu0
        %2253 = vmatprep.mubr.f32.mxu0 0.0
        %2254 = vmatmul.mubr.f32.gmra.mrb[0].mxu0 %v1927
        %v2255 = vpop.f32.mrb[0].mxu0
        %v2256 = vadd.f32 %v1967, %v2255
        %v2257 = vpop.f32.mrb[0].mxu0
        %2258 = vmatprep.mubr.f32.mxu0 0.0
        %2259 = vmatmul.mubr.f32.gmra.mrb[0].mxu0 %v1928
        %v2260 = vpop.f32.mrb[0].mxu0
        %v2261 = vadd.f32 %v1967, %v2260
        %v2262 = vpop.f32.mrb[0].mxu0
        %2263 = vmatprep.mubr.f32.mxu0 0.0
        %2264 = vmatmul.mubr.f32.gmra.mrb[0].mxu0 %v1929
        %v2265 = vpop.f32.mrb[0].mxu0
        %v2266 = vadd.f32 %v1967, %v2265
        %v2267 = vpop.f32.mrb[0].mxu0
        %2268 = vmatprep.mubr.f32.mxu0 0.0
        %2269 = vmatmul.mubr.f32.gmra.mrb[0].mxu0 %v1930
        %v2270 = vpop.f32.mrb[0].mxu0
        %v2271 = vadd.f32 %v1967, %v2270
        %v2272 = vpop.f32.mrb[0].mxu0
        %2273 = vmatprep.mubr.f32.mxu0 0.0
        %2274 = vmatmul.mubr.f32.gmra.mrb[0].mxu0 %v1931
        %v2275 = vpop.f32.mrb[0].mxu0
        %v2276 = vadd.f32 %v1967, %v2275
        %v2277 = vpop.f32.mrb[0].mxu0
        %2278 = vmatprep.mubr.f32.mxu0 0.0
        %2279 = vmatmul.mubr.f32.gmra.mrb[0].mxu0 %v1932
        %v2280 = vpop.f32.mrb[0].mxu0
        %v2281 = vadd.f32 %v1967, %v2280
        %v2282 = vpop.f32.mrb[0].mxu0
        %2283 = vmatprep.mubr.f32.mxu0 0.0
        %2284 = vmatmul.mubr.f32.gmra.mrb[0].mxu0 %v1933
        %v2285 = vpop.f32.mrb[0].mxu0
        %v2286 = vadd.f32 %v1967, %v2285
        %v2287 = vpop.f32.mrb[0].mxu0
        %2288 = vmatprep.mubr.f32.mxu0 0.0
        %2289 = vmatmul.mubr.f32.gmra.mrb[0].mxu0 %v1934
        %v2290 = vpop.f32.mrb[0].mxu0
        %v2291 = vadd.f32 %v1967, %v2290
        %v2292 = vpop.f32.mrb[0].mxu0
        %2293 = vmatprep.mubr.f32.mxu0 0.0
        %2294 = vmatmul.mubr.f32.gmra.mrb[0].mxu0 %v1935
        %v2295 = vpop.f32.mrb[0].mxu0
        %v2296 = vadd.f32 %v1967, %v2295
        %v2297 = vpop.f32.mrb[0].mxu0
        %2298 = vmatprep.mubr.f32.mxu0 0.0
        %2299 = vmatmul.mubr.f32.gmra.mrb[0].mxu0 %v1936
        %v2300 = vpop.f32.mrb[0].mxu0
        %v2301 = vadd.f32 %v1967, %v2300
        %v2302 = vpop.f32.mrb[0].mxu0
        %2303 = vmatprep.mubr.f32.mxu0 0.0
        %2304 = vmatmul.mubr.f32.gmra.mrb[0].mxu0 %v1937
        %v2305 = vpop.f32.mrb[0].mxu0
        %v2306 = vadd.f32 %v1967, %v2305
        %v2307 = vpop.f32.mrb[0].mxu0
        %2308 = vmatprep.mubr.f32.mxu0 0.0
        %2309 = vmatmul.mubr.f32.gmra.mrb[0].mxu0 %v1938
        %v2310 = vpop.f32.mrb[0].mxu0
        %v2311 = vadd.f32 %v1967, %v2310
        %v2312 = vpop.f32.mrb[0].mxu0
        %2313 = vmatprep.mubr.f32.mxu0 0.0
        %2314 = vmatmul.mubr.f32.gmra.mrb[0].mxu0 %v1939
        %v2315 = vpop.f32.mrb[0].mxu0
        %v2316 = vadd.f32 %v1967, %v2315
        %v2317 = vpop.f32.mrb[0].mxu0
        %2318 = vmatprep.mubr.f32.mxu0 0.0
        %2319 = vmatmul.mubr.f32.gmra.mrb[0].mxu0 %v1940
        %v2320 = vpop.f32.mrb[0].mxu0
        %v2321 = vadd.f32 %v1967, %v2320
        %v2322 = vpop.f32.mrb[0].mxu0
        %2323 = vmatprep.mubr.f32.mxu0 0.0
        %2324 = vmatmul.mubr.f32.gmra.mrb[0].mxu0 %v1941
        %v2325 = vpop.f32.mrb[0].mxu0
        %v2326 = vadd.f32 %v1967, %v2325
        %v2327 = vpop.f32.mrb[0].mxu0
        %2328 = vmatprep.mubr.f32.mxu0 0.0
        %2329 = vmatmul.mubr.f32.gmra.mrb[0].mxu0 %v1942
        %v2330 = vpop.f32.mrb[0].mxu0
        %v2331 = vadd.f32 %v1967, %v2330
        %v2332 = vpop.f32.mrb[0].mxu0
        %2333 = vmatprep.mubr.f32.mxu0 0.0
        %2334 = vmatmul.mubr.f32.gmra.mrb[0].mxu0 %v1943
        %v2335 = vpop.f32.mrb[0].mxu0
        %v2336 = vadd.f32 %v1967, %v2335
        %v2337 = vpop.f32.mrb[0].mxu0
        %2338 = vmatprep.mubr.f32.mxu0 0.0
        %2339 = vmatmul.mubr.f32.gmra.mrb[0].mxu0 %v1944
        %v2340 = vpop.f32.mrb[0].mxu0
        %v2341 = vadd.f32 %v1967, %v2340
        %v2342 = vpop.f32.mrb[0].mxu0
        %2343 = vmatprep.mubr.f32.mxu0 0.0
        %2344 = vmatmul.mubr.f32.gmra.mrb[0].mxu0 %v1945
        %v2345 = vpop.f32.mrb[0].mxu0
        %v2346 = vadd.f32 %v1967, %v2345
        %v2347 = vpop.f32.mrb[0].mxu0
        %2348 = vdwg.mxu0
        %2349 = vst [vmem:[%s284] sm:$0xff] %v2036
        %2350 = vst [vmem:[%s284 + $0x8] sm:$0xff] %v2041
        %2351 = vst [vmem:[%s284 + $0x10] sm:$0xff] %v2046
        %2352 = vst [vmem:[%s284 + $0x18] sm:$0xff] %v2051
        %2353 = vst [vmem:[%s284 + $0x20] sm:$0xff] %v2056
        %2354 = vst [vmem:[%s284 + $0x28] sm:$0xff] %v2061
        %2355 = vst [vmem:[%s284 + $0x30] sm:$0xff] %v2066
        %2356 = vst [vmem:[%s284 + $0x38] sm:$0xff] %v2071
        %2357 = vst [vmem:[%s284 + $0x40] sm:$0xff] %v2076
        %2358 = vst [vmem:[%s284 + $0x48] sm:$0xff] %v2081
        %2359 = vst [vmem:[%s284 + $0x50] sm:$0xff] %v2086
        %2360 = vst [vmem:[%s284 + $0x58] sm:$0xff] %v2091
        %2361 = vst [vmem:[%s284 + $0x60] sm:$0xff] %v2096
        %2362 = vst [vmem:[%s284 + $0x68] sm:$0xff] %v2101
        %2363 = vst [vmem:[%s284 + $0x70] sm:$0xff] %v2106
        %2364 = vst [vmem:[%s284 + $0x78] sm:$0xff] %v2111
        %2365 = vst [vmem:[%s284 + $0x80] sm:$0xff] %v2116
        %2366 = vst [vmem:[%s284 + $0x88] sm:$0xff] %v2121
        %2367 = vst [vmem:[%s284 + $0x90] sm:$0xff] %v2126
        %2368 = vst [vmem:[%s284 + $0x98] sm:$0xff] %v2131
        %2369 = vst [vmem:[%s284 + $0xa0] sm:$0xff] %v2136
        %2370 = vst [vmem:[%s284 + $0xa8] sm:$0xff] %v2141
        %2371 = vst [vmem:[%s284 + $0xb0] sm:$0xff] %v2146
        %2372 = vst [vmem:[%s284 + $0xb8] sm:$0xff] %v2151
        %2373 = vst [vmem:[%s284 + $0xc0] sm:$0xff] %v2156
        %2374 = vst [vmem:[%s284 + $0xc8] sm:$0xff] %v2161
        %2375 = vst [vmem:[%s284 + $0xd0] sm:$0xff] %v2166
        %2376 = vst [vmem:[%s284 + $0xd8] sm:$0xff] %v2171
        %2377 = vst [vmem:[%s284 + $0xe0] sm:$0xff] %v2176
        %2378 = vst [vmem:[%s284 + $0xe8] sm:$0xff] %v2181
        %2379 = vst [vmem:[%s284 + $0xf0] sm:$0xff] %v2186
        %2380 = vst [vmem:[%s284 + $0xf8] sm:$0xff] %v2191
        %2381 = vst [vmem:[%s284 + $0x100] sm:$0xff] %v2196
        %2382 = vst [vmem:[%s284 + $0x108] sm:$0xff] %v2201
        %2383 = vst [vmem:[%s284 + $0x110] sm:$0xff] %v2206
        %2384 = vst [vmem:[%s284 + $0x118] sm:$0xff] %v2211
        %2385 = vst [vmem:[%s284 + $0x120] sm:$0xff] %v2216
        %2386 = vst [vmem:[%s284 + $0x128] sm:$0xff] %v2221
        %2387 = vst [vmem:[%s284 + $0x130] sm:$0xff] %v2226
        %2388 = vst [vmem:[%s284 + $0x138] sm:$0xff] %v2231
        %2389 = vst [vmem:[%s284 + $0x140] sm:$0xff] %v2236
        %2390 = vst [vmem:[%s284 + $0x148] sm:$0xff] %v2241
        %2391 = vst [vmem:[%s284 + $0x150] sm:$0xff] %v2246
        %2392 = vst [vmem:[%s284 + $0x158] sm:$0xff] %v2251
        %2393 = vst [vmem:[%s284 + $0x160] sm:$0xff] %v2256
        %2394 = vst [vmem:[%s284 + $0x168] sm:$0xff] %v2261
        %2395 = vst [vmem:[%s284 + $0x170] sm:$0xff] %v2266
        %2396 = vst [vmem:[%s284 + $0x178] sm:$0xff] %v2271
        %2397 = vst [vmem:[%s284 + $0x180] sm:$0xff] %v2276
        %2398 = vst [vmem:[%s284 + $0x188] sm:$0xff] %v2281
        %2399 = vst [vmem:[%s284 + $0x190] sm:$0xff] %v2286
        %2400 = vst [vmem:[%s284 + $0x198] sm:$0xff] %v2291
        %2401 = vst [vmem:[%s284 + $0x1a0] sm:$0xff] %v2296
        %2402 = vst [vmem:[%s284 + $0x1a8] sm:$0xff] %v2301
        %2403 = vst [vmem:[%s284 + $0x1b0] sm:$0xff] %v2306
        %2404 = vst [vmem:[%s284 + $0x1b8] sm:$0xff] %v2311
        %2405 = vst [vmem:[%s284 + $0x1c0] sm:$0xff] %v2316
        %2406 = vst [vmem:[%s284 + $0x1c8] sm:$0xff] %v2321
        %2407 = vst [vmem:[%s284 + $0x1d0] sm:$0xff] %v2326
        %2408 = vst [vmem:[%s284 + $0x1d8] sm:$0xff] %v2331
        %2409 = vst [vmem:[%s284 + $0x1e0] sm:$0xff] %v2336
        %2410 = vst [vmem:[%s284 + $0x1e8] sm:$0xff] %v2341
        %2411 = vst [vmem:[%s284 + $0x1f0] sm:$0xff] %v2346
        %s2412 = sand.u32 %s181, 1
        %s2413 = scalar_lea.sflag [#allocation3], %s2412
        %s2414 = sand.u32 %s181, 1
        %s2415 = smul.addr %s2414, 504
        %s2416 = scalar_lea.vmem [#allocation2], %s2415
        // Predicated region
        $region49: #{tpu_custom_call.1} parent=47 // pred_check
          %p2417 = pneg %p191
        $region50: #{tpu_custom_call.1} parent=47 // pred_check_branch
          %2419 = sbr.rel (%p2417) target = $region52
        $region51: #{tpu_custom_call.1} parent=47 // pred_region
          %s2420 = smul.u32 63, %s21
          %s2421 = ssub.s32 125, %s2420
          %p2422 = scmp.lt.s32.totalorder %s2421, 63
          %s2423 = scalar_select %p2422, %s2421, 63
          %s2424 = smul.u32 128, %s2423
          %s2426 = ssub.s32 8064, %s2424
          %2427 = vsyncadd %s2413, %s2426
          %p2428 = scmp.ne.s32.totalorder 0, %s2424
          %s2429 = smul.addr %s2420, 128
          %s2430 = scalar_lea.hbm %s7, %s2429
          %s2431 = smul.u32 8, %s2423
          %s2432 = sshll.u32 %s2416, 4
          %s2433 = int_to_ptr.vmem [resolvable:$true] %s2432
          %s2434 = sshll.u32 %s2431, 4
          %2438 = dma.vmem_to_hbm [thread:$0]  (%p2428), %s2433, %s2434, %s2430, %s2413, 128, 128, 8
        $region52: #{tpu_custom_call.1} parent=47 // pred_fallthru
          _
      $region48: #{tpu_custom_call.1} parent=5 // pred_fallthru
        _
      %p2439 = scmp.le.s32.totalorder 2, %s16
      // Predicated region
      $region53: #{tpu_custom_call.1} parent=5 // pred_check
        %p2440 = pneg %p2439
      $region54: #{tpu_custom_call.1} parent=5 // pred_check_branch
        %2442 = sbr.rel (%p2440) target = $region56
      $region55: #{tpu_custom_call.1} parent=5 // pred_region
        %s2443 = ssub.s32 %s16, 2
        // Predicated region
        $region57: #{tpu_custom_call.1} parent=55 // pred_check
          %p2444 = pneg %p197
        $region58: #{tpu_custom_call.1} parent=55 // pred_check_branch
          %2446 = sbr.rel (%p2444) target = $region60
        $region59: #{tpu_custom_call.1} parent=55 // pred_region
          %s2447 = sand.u32 %s182, 1
          %s2448 = scalar_lea.sflag [#allocation3], %s2447
          %s2449 = sand.u32 %s182, 1
          %s2450 = smul.addr %s2449, 504
          %s2451 = scalar_lea.vmem [#allocation2], %s2450
          %2452 = dma.done %s2448, 8064
        $region60: #{tpu_custom_call.1} parent=55 // pred_fallthru
          _
      $region56: #{tpu_custom_call.1} parent=5 // pred_fallthru
        _
    $region6: #{tpu_custom_call.1} parent=1 // loop_footer
      %s20 = sadd.s32 1, %s16
    $region7: #{tpu_custom_call.1} parent=1 // loop_footer_branch
      %15 = sbr.rel target = $region3
    $region8: #{tpu_custom_call.1} parent=1 // loop_exit
      _
    %2453 = vsyncpa [#allocation3], 1
    %s2454 = scalar_lea.sflag [#allocation3], 1
    %2455 = vsyncpa %s2454, 1

</llo_original>
